<compile_context>
chip_gen: v5e
topology: v5e:2x2
jax: 0.10.0
libtpu: 0.0.40
codegen_flags: <defaults>
</compile_context>

<pallas_src>
import functools

import jax
import jax.numpy as jnp
from jax import lax
from jax.experimental import pallas as pl
from jax.experimental.pallas import tpu as pltpu

EPS = 1e-10

# Accumulator rows (VMEM scratch, shape (16, LANES), lane-reduced only at the end)
_SUM_P, _SUM_PP, _SUM_T, _SUM_TT, _SUM_F, _SUM_TP, _SUM_FP = range(7)
_MAX_P, _MAX_T, _MAX_F, _NMAX_P, _NMAX_T = range(7, 12)      # NMAX_* hold max(-x)
_ACC_KL, _ACC_SIM, _ACC_CEN = range(12, 15)
_N_ROWS = 16


def _loss_kernel(yt_ref, yf_ref, yp_ref, out_ref, acc_ref, *, n_elems):
    phase = pl.program_id(0)
    step = pl.program_id(1)
    n_steps = pl.num_programs(1)
    n_f = jnp.float32(n_elems)

    # -- helpers: sublane partial reduce per tile (VPU), lane-wide accumulate;
    #    the cross-lane reduce is deferred to _sum_of/_max_of (tiny arrays).
    def _add_rows(rows_terms):
        for row, term in rows_terms:
            acc_ref[row:row + 1, :] = (
                acc_ref[row:row + 1, :] + jnp.sum(term, axis=0, keepdims=True))

    def _max_rows(rows_terms):
        for row, term in rows_terms:
            acc_ref[row:row + 1, :] = jnp.maximum(
                acc_ref[row:row + 1, :], jnp.max(term, axis=0, keepdims=True))

    def _sum_of(row):
        return jnp.sum(acc_ref[row:row + 1, :])

    def _max_of(row):
        return jnp.max(acc_ref[row:row + 1, :])

    # ---------------- one-time init of the persistent accumulator ----------
    @pl.when(jnp.logical_and(phase == 0, step == 0))
    def _init():
        acc_ref[...] = jnp.zeros_like(acc_ref)
        acc_ref[_MAX_P:_NMAX_T + 1, :] = jnp.full(
            (5, acc_ref.shape[1]), -jnp.inf, dtype=jnp.float32)

    # ---------------- pass 1: raw global statistics ------------------------
    @pl.when(phase == 0)
    def _pass1():
        yt = yt_ref[...].astype(jnp.float32)
        yf = yf_ref[...].astype(jnp.float32)
        yp = yp_ref[...].astype(jnp.float32)
        _add_rows([(_SUM_P, yp), (_SUM_PP, yp * yp),
                   (_SUM_T, yt), (_SUM_TT, yt * yt),
                   (_SUM_F, yf), (_SUM_TP, yt * yp), (_SUM_FP, yf * yp)])
        _max_rows([(_MAX_P, yp), (_MAX_T, yt), (_MAX_F, yf),
                   (_NMAX_P, -yp), (_NMAX_T, -yt)])

    # ---------------- pass 2: terms that need the global scalars -----------
    @pl.when(phase == 1)
    def _pass2():
        yt = yt_ref[...].astype(jnp.float32)
        yp = yp_ref[...].astype(jnp.float32)

        s_p = _sum_of(_SUM_P)
        s_t = _sum_of(_SUM_T)
        m_p = _max_of(_MAX_P)
        m_t = _max_of(_MAX_T)
        mn_p = -_max_of(_NMAX_P)
        mn_t = -_max_of(_NMAX_T)

        # scalar prefactors (scalar divides only; arrays only see multiplies)
        inv_mp = 1.0 / m_p                      # no EPS -> matches reference
        sum_yp_s = s_p * inv_mp                 # sum(y_pred / max(y_pred))
        inv_st = 1.0 / (s_t + EPS)
        inv_pn = inv_mp / (sum_yp_s + EPS)

        # kl_divergence elementwise term (mask uses the raw y_true_map)
        yt_n = yt * inv_st
        yp_n = yp * inv_pn
        kl_elem = (yt > 0.1).astype(jnp.float32) * yt_n * \
            jnp.log(yt_n / (yp_n + EPS) + EPS)

        # sim elementwise term: min of the two doubly-normalized maps,
        # with both normalizations folded into one scalar scale each
        rng_p = m_p - mn_p
        rng_t = m_t - mn_t
        sum_p_raw = (s_p - n_f * mn_p) / (rng_p + EPS)
        sum_t_raw = (s_t - n_f * mn_t) / (rng_t + EPS)
        c_p = 1.0 / ((rng_p + EPS) * (sum_p_raw + EPS))
        c_t = 1.0 / ((rng_t + EPS) * (sum_t_raw + EPS))
        sim_elem = jnp.minimum((yp - mn_p) * c_p, (yt - mn_t) * c_t)

        # nss: centered sum of squares (centered form avoids cancellation)
        d = yp - s_p / n_f
        cen_elem = d * d

        _add_rows([(_ACC_KL, kl_elem), (_ACC_SIM, sim_elem),
                   (_ACC_CEN, cen_elem)])

    # ---------------- finalize: assemble the four losses --------------------
    @pl.when(jnp.logical_and(phase == 1, step == n_steps - 1))
    def _finalize():
        s_p, q_p = _sum_of(_SUM_P), _sum_of(_SUM_PP)
        s_t, q_t = _sum_of(_SUM_T), _sum_of(_SUM_TT)
        s_f = _sum_of(_SUM_F)
        c_tp, c_fp = _sum_of(_SUM_TP), _sum_of(_SUM_FP)
        m_p, m_t, m_f = _max_of(_MAX_P), _max_of(_MAX_T), _max_of(_MAX_F)
        a_kl, a_sim, a_cen = _sum_of(_ACC_KL), _sum_of(_ACC_SIM), _sum_of(_ACC_CEN)

        inv_mp = 1.0 / m_p
        sum_yp_s = s_p * inv_mp
        inv_st = 1.0 / (s_t + EPS)
        inv_sps = 1.0 / (sum_yp_s + EPS)

        # ---- kl_divergence
        loss_kl = a_kl

        # ---- correlation_coefficient (all sums derived from raw statistics)
        y_bool_cc = (m_t > 0.1).astype(jnp.float32)
        sum_prod = c_tp * inv_st * inv_mp * inv_sps
        sum_x = s_t * inv_st
        sum_y = sum_yp_s * inv_sps
        sum_x_sq = q_t * inv_st * inv_st + EPS
        sum_y_sq = q_p * inv_mp * inv_mp * inv_sps * inv_sps + EPS
        num = sum_prod - sum_x * sum_y / n_f
        den_sq = (sum_x_sq - sum_x * sum_x / n_f) * \
                 (sum_y_sq - sum_y * sum_y / n_f)
        loss_cc = y_bool_cc * (-2.0 * num * lax.rsqrt(den_sq))

        # ---- nss (torch.std -> unbiased N-1 divisor)
        y_bool_nss = (m_f > 0.1).astype(jnp.float32)
        y_mean = sum_yp_s / n_f
        y_std = jnp.sqrt(a_cen * inv_mp * inv_mp / (n_f - 1.0))
        nss_num = (c_fp * inv_mp - y_mean * s_f) / (y_std + EPS)
        loss_nss = -1.0 * (y_bool_nss * nss_num / s_f)

        # ---- sim
        loss_sim = a_sim

        out_ref[0, 0] = loss_kl + loss_cc + loss_nss + loss_sim


def pallas_loss(y_true_map, y_true_fix, y_pred):
    """Combined saliency loss (kl + cc + nss + sim); returns a scalar float32."""
    assert y_pred.ndim == 2
    assert y_true_map.shape == y_pred.shape == y_true_fix.shape
    n_elems = y_pred.shape[0] * y_pred.shape[1]   # N in the reference formulas

    # Lane-dense relayout — semantically free (all reductions are global).
    lanes = None
    for cand in (2048, 1024, 512, 256, 128):
        if n_elems % cand == 0:
            lanes = cand
            break
    if lanes is None:
        rows, lanes = y_pred.shape                # fall back: original layout
        relayout = lambda x: x
    else:
        rows = n_elems // lanes
        relayout = lambda x: x.reshape(rows, lanes)

    # Tile sizing: ~1 MiB per input tile -> 3 inputs x 2 pipeline buffers ~6 MiB,
    # safe under scoped-VMEM defaults on v5e (16 MiB), v6e (32 MiB), v7x (32/64 MiB).
    max_tile_rows = max(8, (1 << 20) // (4 * lanes))
    if rows <= max_tile_rows:
        tile_rows = rows
    else:
        tile_rows = None
        for tr in range(max_tile_rows - max_tile_rows % 8, 7, -8):
            if rows % tr == 0:
                tile_rows = tr
                break
        if tile_rows is None:
            tile_rows = rows                       # no aligned divisor: one block
    n_tiles = rows // tile_rows

    yt = relayout(y_true_map)
    yf = relayout(y_true_fix)
    yp = relayout(y_pred)

    kernel = functools.partial(_loss_kernel, n_elems=n_elems)
    tile_spec = pl.BlockSpec((tile_rows, lanes), lambda p, t: (t, 0))

    out = pl.pallas_call(
        kernel,
        out_shape=jax.ShapeDtypeStruct((1, 1), jnp.float32),
        grid=(2, n_tiles),                         # (phase, tile)
        in_specs=[tile_spec, tile_spec, tile_spec],
        out_specs=pl.BlockSpec((1, 1), lambda p, t: (0, 0),
                               memory_space=pltpu.SMEM),
        scratch_shapes=[pltpu.VMEM((_N_ROWS, lanes), jnp.float32)],
        compiler_params=pltpu.CompilerParams(
            dimension_semantics=("arbitrary", "arbitrary")),
    )(yt, yf, yp)
    return out[0, 0]


# ----------------------------- pure-JAX reference ---------------------------
def _reference_loss(yt_map, yt_fix, yp):
    n = yp.shape[0] * yp.shape[1]
    max_yp = jnp.max(yp)
    yp_s = yp / max_yp
    yt_n = yt_map / (jnp.sum(yt_map) + EPS)
    yp_n = yp_s / (jnp.sum(yp_s) + EPS)
    # kl
    l_kl = jnp.sum((yt_map > 0.1).astype(jnp.float32) * yt_n *
                   jnp.log(yt_n / (yp_n + EPS) + EPS))
    # cc
    yb = (jnp.max(yt_map) > 0.1).astype(jnp.float32)
    sp = jnp.sum(yt_n * yp_n)
    sx, sy = jnp.sum(yt_n), jnp.sum(yp_n)
    sxs = jnp.sum(yt_n ** 2) + EPS
    sys_ = jnp.sum(yp_n ** 2) + EPS
    num = sp - sx * sy / n
    den = jnp.sqrt((sxs - sx ** 2 / n) * (sys_ - sy ** 2 / n))
    l_cc = yb * (-2 * num / den)
    # nss
    ybn = (jnp.max(yt_fix) > 0.1).astype(jnp.float32)
    m = jnp.mean(yp_s)
    s = jnp.sqrt(jnp.sum((yp_s - m) ** 2) / (n - 1))
    yp_z = (yp_s - m) / (s + EPS)
    l_nss = -1.0 * (ybn * jnp.sum(yt_fix * yp_z) / jnp.sum(yt_fix))
    # sim
    p = (yp - jnp.min(yp)) / (jnp.max(yp) - jnp.min(yp) + EPS)
    p = p / (jnp.sum(p) + EPS)
    q = (yt_map - jnp.min(yt_map)) / (jnp.max(yt_map) - jnp.min(yt_map) + EPS)
    q = q / (jnp.sum(q) + EPS)
    l_sim = jnp.sum(jnp.minimum(p, q))
    return l_kl + l_cc + l_nss + l_sim


if __name__ == "__main__":
    key = jax.random.PRNGKey(0)
    k1, k2, k3 = jax.random.split(key, 3)

    B, HW = 2, 256  # e.g. a 16x16 saliency map, flattened
    y_true_map = jax.random.uniform(k1, (B, HW), dtype=jnp.float32)
    y_true_fix = (jax.random.uniform(k2, (B, HW)) > 0.8).astype(jnp.float32)
    y_pred = jax.random.uniform(
        k3, (B, HW), dtype=jnp.float32, minval=0.05, maxval=1.0)

    loss = jax.block_until_ready(pallas_loss(y_true_map, y_true_fix, y_pred))
    ref = jax.block_until_ready(_reference_loss(y_true_map, y_true_fix, y_pred))

    assert jnp.isfinite(loss), "loss is not finite"
    assert jnp.allclose(loss, ref, rtol=1e-4, atol=1e-4), (loss, ref)
    print("KERNEL_OK")
</pallas_src>

<mosaic_0001>
module attributes {stable_mosaic.version = 11 : i64} {
  func.func @_loss_kernel(%arg0: i32, %arg1: i32, %arg2: memref<1x512xf32, #tpu.memory_space<vmem>>, %arg3: memref<1x512xf32, #tpu.memory_space<vmem>>, %arg4: memref<1x512xf32, #tpu.memory_space<vmem>>, %arg5: memref<1x1xf32, #tpu.memory_space<smem>>, %arg6: memref<16x512xf32, #tpu.memory_space<vmem>>) attributes {dimension_semantics = [#tpu.dimension_semantics<arbitrary>, #tpu.dimension_semantics<arbitrary>], iteration_bounds = array<i64: 2, 1>, scalar_prefetch = 0 : i64, scratch_operands = 1 : i64, tpu.core_type = #tpu.core_type<tc>, window_params = [{transform_indices = @transform_0, window_bounds = array<i64: 1, 512>}, {transform_indices = @transform_1, window_bounds = array<i64: 1, 512>}, {transform_indices = @transform_2, window_bounds = array<i64: 1, 512>}, {transform_indices = @transform_3, window_bounds = array<i64: 1, 1>}]} {
    %c0_i32 = arith.constant 0 : i32
    %0 = arith.cmpi eq, %arg0, %c0_i32 : i32
    %c0_i32_0 = arith.constant 0 : i32
    %1 = arith.cmpi eq, %arg1, %c0_i32_0 : i32
    %2 = arith.andi %0, %1 : i1
    %3 = arith.extui %2 : i1 to i32
    %c0_i32_1 = arith.constant 0 : i32
    %4 = arith.cmpi ne, %3, %c0_i32_1 : i32
    scf.if %4 {
      %cst_9 = arith.constant 0.000000e+00 : f32
      %16 = vector.broadcast %cst_9 : f32 to vector<16x512xf32>
      %c0 = arith.constant 0 : index
      %c0_10 = arith.constant 0 : index
      %17 = vector.load %arg6[%c0, %c0_10] : memref<16x512xf32, #tpu.memory_space<vmem>>, vector<16x512xf32>
      tpu.vector_store %arg6[%c0, %c0_10], %16 {strides = array<i32>} : memref<16x512xf32, #tpu.memory_space<vmem>>, vector<16x512xf32>,
      %cst_11 = arith.constant 0xFF800000 : f32
      %18 = vector.broadcast %cst_11 : f32 to vector<5x512xf32>
      %c7 = arith.constant 7 : index
      %c0_12 = arith.constant 0 : index
      %19 = vector.load %arg6[%c7, %c0_12] : memref<16x512xf32, #tpu.memory_space<vmem>>, vector<5x512xf32>
      tpu.vector_store %arg6[%c7, %c0_12], %18 {strides = array<i32>} : memref<16x512xf32, #tpu.memory_space<vmem>>, vector<5x512xf32>,
    } else {
    }
    %c0_i32_2 = arith.constant 0 : i32
    %5 = arith.cmpi eq, %arg0, %c0_i32_2 : i32
    %6 = arith.extui %5 : i1 to i32
    %c0_i32_3 = arith.constant 0 : i32
    %7 = arith.cmpi ne, %6, %c0_i32_3 : i32
    scf.if %7 {
      %c0 = arith.constant 0 : index
      %c0_9 = arith.constant 0 : index
      %16 = vector.load %arg2[%c0, %c0_9] : memref<1x512xf32, #tpu.memory_space<vmem>>, vector<1x512xf32>
      %c0_10 = arith.constant 0 : index
      %c0_11 = arith.constant 0 : index
      %17 = vector.load %arg3[%c0_10, %c0_11] : memref<1x512xf32, #tpu.memory_space<vmem>>, vector<1x512xf32>
      %c0_12 = arith.constant 0 : index
      %c0_13 = arith.constant 0 : index
      %18 = vector.load %arg4[%c0_12, %c0_13] : memref<1x512xf32, #tpu.memory_space<vmem>>, vector<1x512xf32>
      %19 = arith.mulf %18, %18 : vector<1x512xf32>
      %20 = arith.mulf %16, %16 : vector<1x512xf32>
      %21 = arith.mulf %16, %18 : vector<1x512xf32>
      %22 = arith.mulf %17, %18 : vector<1x512xf32>
      %c0_14 = arith.constant 0 : index
      %c0_15 = arith.constant 0 : index
      %23 = vector.load %arg6[%c0_14, %c0_15] : memref<16x512xf32, #tpu.memory_space<vmem>>, vector<1x512xf32>
      %cst_16 = arith.constant dense<0.000000e+00> : vector<512xf32>
      %24 = vector.multi_reduction <add>, %18, %cst_16 [0] : vector<1x512xf32> to vector<512xf32>
      %25 = vector.shape_cast %24 : vector<512xf32> to vector<1x512xf32>
      %26 = arith.addf %23, %25 : vector<1x512xf32>
      %c0_17 = arith.constant 0 : index
      %c0_18 = arith.constant 0 : index
      %27 = vector.load %arg6[%c0_17, %c0_18] : memref<16x512xf32, #tpu.memory_space<vmem>>, vector<1x512xf32>
      tpu.vector_store %arg6[%c0_17, %c0_18], %26 {strides = array<i32>} : memref<16x512xf32, #tpu.memory_space<vmem>>, vector<1x512xf32>,
      %c1 = arith.constant 1 : index
      %c0_19 = arith.constant 0 : index
      %28 = vector.load %arg6[%c1, %c0_19] : memref<16x512xf32, #tpu.memory_space<vmem>>, vector<1x512xf32>
      %cst_20 = arith.constant dense<0.000000e+00> : vector<512xf32>
      %29 = vector.multi_reduction <add>, %19, %cst_20 [0] : vector<1x512xf32> to vector<512xf32>
      %30 = vector.shape_cast %29 : vector<512xf32> to vector<1x512xf32>
      %31 = arith.addf %28, %30 : vector<1x512xf32>
      %c1_21 = arith.constant 1 : index
      %c0_22 = arith.constant 0 : index
      %32 = vector.load %arg6[%c1_21, %c0_22] : memref<16x512xf32, #tpu.memory_space<vmem>>, vector<1x512xf32>
      tpu.vector_store %arg6[%c1_21, %c0_22], %31 {strides = array<i32>} : memref<16x512xf32, #tpu.memory_space<vmem>>, vector<1x512xf32>,
      %c2 = arith.constant 2 : index
      %c0_23 = arith.constant 0 : index
      %33 = vector.load %arg6[%c2, %c0_23] : memref<16x512xf32, #tpu.memory_space<vmem>>, vector<1x512xf32>
      %cst_24 = arith.constant dense<0.000000e+00> : vector<512xf32>
      %34 = vector.multi_reduction <add>, %16, %cst_24 [0] : vector<1x512xf32> to vector<512xf32>
      %35 = vector.shape_cast %34 : vector<512xf32> to vector<1x512xf32>
      %36 = arith.addf %33, %35 : vector<1x512xf32>
      %c2_25 = arith.constant 2 : index
      %c0_26 = arith.constant 0 : index
      %37 = vector.load %arg6[%c2_25, %c0_26] : memref<16x512xf32, #tpu.memory_space<vmem>>, vector<1x512xf32>
      tpu.vector_store %arg6[%c2_25, %c0_26], %36 {strides = array<i32>} : memref<16x512xf32, #tpu.memory_space<vmem>>, vector<1x512xf32>,
      %c3 = arith.constant 3 : index
      %c0_27 = arith.constant 0 : index
      %38 = vector.load %arg6[%c3, %c0_27] : memref<16x512xf32, #tpu.memory_space<vmem>>, vector<1x512xf32>
      %cst_28 = arith.constant dense<0.000000e+00> : vector<512xf32>
      %39 = vector.multi_reduction <add>, %20, %cst_28 [0] : vector<1x512xf32> to vector<512xf32>
      %40 = vector.shape_cast %39 : vector<512xf32> to vector<1x512xf32>
      %41 = arith.addf %38, %40 : vector<1x512xf32>
      %c3_29 = arith.constant 3 : index
      %c0_30 = arith.constant 0 : index
      %42 = vector.load %arg6[%c3_29, %c0_30] : memref<16x512xf32, #tpu.memory_space<vmem>>, vector<1x512xf32>
      tpu.vector_store %arg6[%c3_29, %c0_30], %41 {strides = array<i32>} : memref<16x512xf32, #tpu.memory_space<vmem>>, vector<1x512xf32>,
      %c4 = arith.constant 4 : index
      %c0_31 = arith.constant 0 : index
      %43 = vector.load %arg6[%c4, %c0_31] : memref<16x512xf32, #tpu.memory_space<vmem>>, vector<1x512xf32>
      %cst_32 = arith.constant dense<0.000000e+00> : vector<512xf32>
      %44 = vector.multi_reduction <add>, %17, %cst_32 [0] : vector<1x512xf32> to vector<512xf32>
      %45 = vector.shape_cast %44 : vector<512xf32> to vector<1x512xf32>
      %46 = arith.addf %43, %45 : vector<1x512xf32>
      %c4_33 = arith.constant 4 : index
      %c0_34 = arith.constant 0 : index
      %47 = vector.load %arg6[%c4_33, %c0_34] : memref<16x512xf32, #tpu.memory_space<vmem>>, vector<1x512xf32>
      tpu.vector_store %arg6[%c4_33, %c0_34], %46 {strides = array<i32>} : memref<16x512xf32, #tpu.memory_space<vmem>>, vector<1x512xf32>,
      %c5 = arith.constant 5 : index
      %c0_35 = arith.constant 0 : index
      %48 = vector.load %arg6[%c5, %c0_35] : memref<16x512xf32, #tpu.memory_space<vmem>>, vector<1x512xf32>
      %cst_36 = arith.constant dense<0.000000e+00> : vector<512xf32>
      %49 = vector.multi_reduction <add>, %21, %cst_36 [0] : vector<1x512xf32> to vector<512xf32>
      %50 = vector.shape_cast %49 : vector<512xf32> to vector<1x512xf32>
      %51 = arith.addf %48, %50 : vector<1x512xf32>
      %c5_37 = arith.constant 5 : index
      %c0_38 = arith.constant 0 : index
      %52 = vector.load %arg6[%c5_37, %c0_38] : memref<16x512xf32, #tpu.memory_space<vmem>>, vector<1x512xf32>
      tpu.vector_store %arg6[%c5_37, %c0_38], %51 {strides = array<i32>} : memref<16x512xf32, #tpu.memory_space<vmem>>, vector<1x512xf32>,
      %c6 = arith.constant 6 : index
      %c0_39 = arith.constant 0 : index
      %53 = vector.load %arg6[%c6, %c0_39] : memref<16x512xf32, #tpu.memory_space<vmem>>, vector<1x512xf32>
      %cst_40 = arith.constant dense<0.000000e+00> : vector<512xf32>
      %54 = vector.multi_reduction <add>, %22, %cst_40 [0] : vector<1x512xf32> to vector<512xf32>
      %55 = vector.shape_cast %54 : vector<512xf32> to vector<1x512xf32>
      %56 = arith.addf %53, %55 : vector<1x512xf32>
      %c6_41 = arith.constant 6 : index
      %c0_42 = arith.constant 0 : index
      %57 = vector.load %arg6[%c6_41, %c0_42] : memref<16x512xf32, #tpu.memory_space<vmem>>, vector<1x512xf32>
      tpu.vector_store %arg6[%c6_41, %c0_42], %56 {strides = array<i32>} : memref<16x512xf32, #tpu.memory_space<vmem>>, vector<1x512xf32>,
      %cst_43 = arith.constant 0.000000e+00 : f32
      %58 = vector.broadcast %cst_43 : f32 to vector<1x512xf32>
      %59 = arith.subf %58, %18 : vector<1x512xf32>
      %cst_44 = arith.constant 0.000000e+00 : f32
      %60 = vector.broadcast %cst_44 : f32 to vector<1x512xf32>
      %61 = arith.subf %60, %16 : vector<1x512xf32>
      %c7 = arith.constant 7 : index
      %c0_45 = arith.constant 0 : index
      %62 = vector.load %arg6[%c7, %c0_45] : memref<16x512xf32, #tpu.memory_space<vmem>>, vector<1x512xf32>
      %cst_46 = arith.constant dense<0xFF800000> : vector<512xf32>
      %63 = vector.multi_reduction <maximumf>, %18, %cst_46 [0] : vector<1x512xf32> to vector<512xf32>
      %64 = vector.shape_cast %63 : vector<512xf32> to vector<1x512xf32>
      %65 = arith.maximumf %62, %64 : vector<1x512xf32>
      %c7_47 = arith.constant 7 : index
      %c0_48 = arith.constant 0 : index
      %66 = vector.load %arg6[%c7_47, %c0_48] : memref<16x512xf32, #tpu.memory_space<vmem>>, vector<1x512xf32>
      tpu.vector_store %arg6[%c7_47, %c0_48], %65 {strides = array<i32>} : memref<16x512xf32, #tpu.memory_space<vmem>>, vector<1x512xf32>,
      %c8 = arith.constant 8 : index
      %c0_49 = arith.constant 0 : index
      %67 = vector.load %arg6[%c8, %c0_49] : memref<16x512xf32, #tpu.memory_space<vmem>>, vector<1x512xf32>
      %cst_50 = arith.constant dense<0xFF800000> : vector<512xf32>
      %68 = vector.multi_reduction <maximumf>, %16, %cst_50 [0] : vector<1x512xf32> to vector<512xf32>
      %69 = vector.shape_cast %68 : vector<512xf32> to vector<1x512xf32>
      %70 = arith.maximumf %67, %69 : vector<1x512xf32>
      %c8_51 = arith.constant 8 : index
      %c0_52 = arith.constant 0 : index
      %71 = vector.load %arg6[%c8_51, %c0_52] : memref<16x512xf32, #tpu.memory_space<vmem>>, vector<1x512xf32>
      tpu.vector_store %arg6[%c8_51, %c0_52], %70 {strides = array<i32>} : memref<16x512xf32, #tpu.memory_space<vmem>>, vector<1x512xf32>,
      %c9 = arith.constant 9 : index
      %c0_53 = arith.constant 0 : index
      %72 = vector.load %arg6[%c9, %c0_53] : memref<16x512xf32, #tpu.memory_space<vmem>>, vector<1x512xf32>
      %cst_54 = arith.constant dense<0xFF800000> : vector<512xf32>
      %73 = vector.multi_reduction <maximumf>, %17, %cst_54 [0] : vector<1x512xf32> to vector<512xf32>
      %74 = vector.shape_cast %73 : vector<512xf32> to vector<1x512xf32>
      %75 = arith.maximumf %72, %74 : vector<1x512xf32>
      %c9_55 = arith.constant 9 : index
      %c0_56 = arith.constant 0 : index
      %76 = vector.load %arg6[%c9_55, %c0_56] : memref<16x512xf32, #tpu.memory_space<vmem>>, vector<1x512xf32>
      tpu.vector_store %arg6[%c9_55, %c0_56], %75 {strides = array<i32>} : memref<16x512xf32, #tpu.memory_space<vmem>>, vector<1x512xf32>,
      %c10 = arith.constant 10 : index
      %c0_57 = arith.constant 0 : index
      %77 = vector.load %arg6[%c10, %c0_57] : memref<16x512xf32, #tpu.memory_space<vmem>>, vector<1x512xf32>
      %cst_58 = arith.constant dense<0xFF800000> : vector<512xf32>
      %78 = vector.multi_reduction <maximumf>, %59, %cst_58 [0] : vector<1x512xf32> to vector<512xf32>
      %79 = vector.shape_cast %78 : vector<512xf32> to vector<1x512xf32>
      %80 = arith.maximumf %77, %79 : vector<1x512xf32>
      %c10_59 = arith.constant 10 : index
      %c0_60 = arith.constant 0 : index
      %81 = vector.load %arg6[%c10_59, %c0_60] : memref<16x512xf32, #tpu.memory_space<vmem>>, vector<1x512xf32>
      tpu.vector_store %arg6[%c10_59, %c0_60], %80 {strides = array<i32>} : memref<16x512xf32, #tpu.memory_space<vmem>>, vector<1x512xf32>,
      %c11 = arith.constant 11 : index
      %c0_61 = arith.constant 0 : index
      %82 = vector.load %arg6[%c11, %c0_61] : memref<16x512xf32, #tpu.memory_space<vmem>>, vector<1x512xf32>
      %cst_62 = arith.constant dense<0xFF800000> : vector<512xf32>
      %83 = vector.multi_reduction <maximumf>, %61, %cst_62 [0] : vector<1x512xf32> to vector<512xf32>
      %84 = vector.shape_cast %83 : vector<512xf32> to vector<1x512xf32>
      %85 = arith.maximumf %82, %84 : vector<1x512xf32>
      %c11_63 = arith.constant 11 : index
      %c0_64 = arith.constant 0 : index
      %86 = vector.load %arg6[%c11_63, %c0_64] : memref<16x512xf32, #tpu.memory_space<vmem>>, vector<1x512xf32>
      tpu.vector_store %arg6[%c11_63, %c0_64], %85 {strides = array<i32>} : memref<16x512xf32, #tpu.memory_space<vmem>>, vector<1x512xf32>,
    } else {
    }
    %c1_i32 = arith.constant 1 : i32
    %8 = arith.cmpi eq, %arg0, %c1_i32 : i32
    %9 = arith.extui %8 : i1 to i32
    %cst = arith.constant 5.120000e+02 : f32
    %c0_i32_4 = arith.constant 0 : i32
    %10 = arith.cmpi ne, %9, %c0_i32_4 : i32
    scf.if %10 {
      %c0 = arith.constant 0 : index
      %c0_9 = arith.constant 0 : index
      %16 = vector.load %arg2[%c0, %c0_9] : memref<1x512xf32, #tpu.memory_space<vmem>>, vector<1x512xf32>
      %c0_10 = arith.constant 0 : index
      %c0_11 = arith.constant 0 : index
      %17 = vector.load %arg4[%c0_10, %c0_11] : memref<1x512xf32, #tpu.memory_space<vmem>>, vector<1x512xf32>
      %c0_12 = arith.constant 0 : index
      %c0_13 = arith.constant 0 : index
      %18 = vector.load %arg6[%c0_12, %c0_13] : memref<16x512xf32, #tpu.memory_space<vmem>>, vector<1x512xf32>
      %19 = vector.shape_cast %18 : vector<1x512xf32> to vector<1x1x512xf32>
      %cst_14 = arith.constant dense<0.000000e+00> : vector<1xf32>
      %20 = vector.multi_reduction <add>, %19, %cst_14 [1, 2] : vector<1x1x512xf32> to vector<1xf32>
      %21 = vector.shape_cast %20 : vector<1xf32> to vector<1x1x1xf32>
      %22 = vector.extract %21[0, 0, 0] : f32 from vector<1x1x1xf32>
      %c2 = arith.constant 2 : index
      %c0_15 = arith.constant 0 : index
      %23 = vector.load %arg6[%c2, %c0_15] : memref<16x512xf32, #tpu.memory_space<vmem>>, vector<1x512xf32>
      %24 = vector.shape_cast %23 : vector<1x512xf32> to vector<1x1x512xf32>
      %cst_16 = arith.constant dense<0.000000e+00> : vector<1xf32>
      %25 = vector.multi_reduction <add>, %24, %cst_16 [1, 2] : vector<1x1x512xf32> to vector<1xf32>
      %26 = vector.shape_cast %25 : vector<1xf32> to vector<1x1x1xf32>
      %27 = vector.extract %26[0, 0, 0] : f32 from vector<1x1x1xf32>
      %c7 = arith.constant 7 : index
      %c0_17 = arith.constant 0 : index
      %28 = vector.load %arg6[%c7, %c0_17] : memref<16x512xf32, #tpu.memory_space<vmem>>, vector<1x512xf32>
      %29 = vector.shape_cast %28 : vector<1x512xf32> to vector<1x1x512xf32>
      %cst_18 = arith.constant dense<0xFF800000> : vector<1xf32>
      %30 = vector.multi_reduction <maximumf>, %29, %cst_18 [1, 2] : vector<1x1x512xf32> to vector<1xf32>
      %31 = vector.shape_cast %30 : vector<1xf32> to vector<1x1x1xf32>
      %32 = vector.extract %31[0, 0, 0] : f32 from vector<1x1x1xf32>
      %c8 = arith.constant 8 : index
      %c0_19 = arith.constant 0 : index
      %33 = vector.load %arg6[%c8, %c0_19] : memref<16x512xf32, #tpu.memory_space<vmem>>, vector<1x512xf32>
      %34 = vector.shape_cast %33 : vector<1x512xf32> to vector<1x1x512xf32>
      %cst_20 = arith.constant dense<0xFF800000> : vector<1xf32>
      %35 = vector.multi_reduction <maximumf>, %34, %cst_20 [1, 2] : vector<1x1x512xf32> to vector<1xf32>
      %36 = vector.shape_cast %35 : vector<1xf32> to vector<1x1x1xf32>
      %37 = vector.extract %36[0, 0, 0] : f32 from vector<1x1x1xf32>
      %c10 = arith.constant 10 : index
      %c0_21 = arith.constant 0 : index
      %38 = vector.load %arg6[%c10, %c0_21] : memref<16x512xf32, #tpu.memory_space<vmem>>, vector<1x512xf32>
      %39 = vector.shape_cast %38 : vector<1x512xf32> to vector<1x1x512xf32>
      %cst_22 = arith.constant dense<0xFF800000> : vector<1xf32>
      %40 = vector.multi_reduction <maximumf>, %39, %cst_22 [1, 2] : vector<1x1x512xf32> to vector<1xf32>
      %41 = vector.shape_cast %40 : vector<1xf32> to vector<1x1x1xf32>
      %42 = vector.extract %41[0, 0, 0] : f32 from vector<1x1x1xf32>
      %cst_23 = arith.constant 0.000000e+00 : f32
      %43 = arith.subf %cst_23, %42 : f32
      %c11 = arith.constant 11 : index
      %c0_24 = arith.constant 0 : index
      %44 = vector.load %arg6[%c11, %c0_24] : memref<16x512xf32, #tpu.memory_space<vmem>>, vector<1x512xf32>
      %45 = vector.shape_cast %44 : vector<1x512xf32> to vector<1x1x512xf32>
      %cst_25 = arith.constant dense<0xFF800000> : vector<1xf32>
      %46 = vector.multi_reduction <maximumf>, %45, %cst_25 [1, 2] : vector<1x1x512xf32> to vector<1xf32>
      %47 = vector.shape_cast %46 : vector<1xf32> to vector<1x1x1xf32>
      %48 = vector.extract %47[0, 0, 0] : f32 from vector<1x1x1xf32>
      %cst_26 = arith.constant 0.000000e+00 : f32
      %49 = arith.subf %cst_26, %48 : f32
      %cst_27 = arith.constant 1.000000e+00 : f32
      %50 = arith.divf %cst_27, %32 : f32
      %51 = arith.mulf %22, %50 : f32
      %cst_28 = arith.constant 1.000000e-10 : f32
      %52 = arith.addf %27, %cst_28 : f32
      %cst_29 = arith.constant 1.000000e+00 : f32
      %53 = arith.divf %cst_29, %52 : f32
      %cst_30 = arith.constant 1.000000e-10 : f32
      %54 = arith.addf %51, %cst_30 : f32
      %55 = arith.divf %50, %54 : f32
      %56 = vector.broadcast %53 : f32 to vector<1x512xf32>
      %57 = arith.mulf %16, %56 : vector<1x512xf32>
      %58 = vector.broadcast %55 : f32 to vector<1x512xf32>
      %59 = arith.mulf %17, %58 : vector<1x512xf32>
      %cst_31 = arith.constant 1.000000e-01 : f32
      %60 = vector.broadcast %cst_31 : f32 to vector<1x512xf32>
      %61 = arith.cmpf ogt, %16, %60 : vector<1x512xf32>
      %62 = arith.extui %61 : vector<1x512xi1> to vector<1x512xi32>
      %63 = arith.sitofp %62 : vector<1x512xi32> to vector<1x512xf32>
      %64 = arith.mulf %63, %57 : vector<1x512xf32>
      %cst_32 = arith.constant 1.000000e-10 : f32
      %65 = vector.broadcast %cst_32 : f32 to vector<1x512xf32>
      %66 = arith.addf %59, %65 : vector<1x512xf32>
      %67 = arith.divf %57, %66 : vector<1x512xf32>
      %cst_33 = arith.constant 1.000000e-10 : f32
      %68 = vector.broadcast %cst_33 : f32 to vector<1x512xf32>
      %69 = arith.addf %67, %68 : vector<1x512xf32>
      %70 = math.log %69 : vector<1x512xf32>
      %71 = arith.mulf %64, %70 : vector<1x512xf32>
      %72 = arith.subf %32, %43 : f32
      %73 = arith.subf %37, %49 : f32
      %74 = arith.mulf %cst, %43 : f32
      %75 = arith.subf %22, %74 : f32
      %cst_34 = arith.constant 1.000000e-10 : f32
      %76 = arith.addf %72, %cst_34 : f32
      %77 = arith.divf %75, %76 : f32
      %78 = arith.mulf %cst, %49 : f32
      %79 = arith.subf %27, %78 : f32
      %cst_35 = arith.constant 1.000000e-10 : f32
      %80 = arith.addf %73, %cst_35 : f32
      %81 = arith.divf %79, %80 : f32
      %cst_36 = arith.constant 1.000000e-10 : f32
      %82 = arith.addf %72, %cst_36 : f32
      %cst_37 = arith.constant 1.000000e-10 : f32
      %83 = arith.addf %77, %cst_37 : f32
      %84 = arith.mulf %82, %83 : f32
      %cst_38 = arith.constant 1.000000e+00 : f32
      %85 = arith.divf %cst_38, %84 : f32
      %cst_39 = arith.constant 1.000000e-10 : f32
      %86 = arith.addf %73, %cst_39 : f32
      %cst_40 = arith.constant 1.000000e-10 : f32
      %87 = arith.addf %81, %cst_40 : f32
      %88 = arith.mulf %86, %87 : f32
      %cst_41 = arith.constant 1.000000e+00 : f32
      %89 = arith.divf %cst_41, %88 : f32
      %90 = vector.broadcast %43 : f32 to vector<1x512xf32>
      %91 = arith.subf %17, %90 : vector<1x512xf32>
      %92 = vector.broadcast %85 : f32 to vector<1x512xf32>
      %93 = arith.mulf %91, %92 : vector<1x512xf32>
      %94 = vector.broadcast %49 : f32 to vector<1x512xf32>
      %95 = arith.subf %16, %94 : vector<1x512xf32>
      %96 = vector.broadcast %89 : f32 to vector<1x512xf32>
      %97 = arith.mulf %95, %96 : vector<1x512xf32>
      %98 = arith.minimumf %93, %97 : vector<1x512xf32>
      %99 = arith.divf %22, %cst : f32
      %100 = vector.broadcast %99 : f32 to vector<1x512xf32>
      %101 = arith.subf %17, %100 : vector<1x512xf32>
      %102 = arith.mulf %101, %101 : vector<1x512xf32>
      %c12 = arith.constant 12 : index
      %c0_42 = arith.constant 0 : index
      %103 = vector.load %arg6[%c12, %c0_42] : memref<16x512xf32, #tpu.memory_space<vmem>>, vector<1x512xf32>
      %cst_43 = arith.constant dense<0.000000e+00> : vector<512xf32>
      %104 = vector.multi_reduction <add>, %71, %cst_43 [0] : vector<1x512xf32> to vector<512xf32>
      %105 = vector.shape_cast %104 : vector<512xf32> to vector<1x512xf32>
      %106 = arith.addf %103, %105 : vector<1x512xf32>
      %c12_44 = arith.constant 12 : index
      %c0_45 = arith.constant 0 : index
      %107 = vector.load %arg6[%c12_44, %c0_45] : memref<16x512xf32, #tpu.memory_space<vmem>>, vector<1x512xf32>
      tpu.vector_store %arg6[%c12_44, %c0_45], %106 {strides = array<i32>} : memref<16x512xf32, #tpu.memory_space<vmem>>, vector<1x512xf32>,
      %c13 = arith.constant 13 : index
      %c0_46 = arith.constant 0 : index
      %108 = vector.load %arg6[%c13, %c0_46] : memref<16x512xf32, #tpu.memory_space<vmem>>, vector<1x512xf32>
      %cst_47 = arith.constant dense<0.000000e+00> : vector<512xf32>
      %109 = vector.multi_reduction <add>, %98, %cst_47 [0] : vector<1x512xf32> to vector<512xf32>
      %110 = vector.shape_cast %109 : vector<512xf32> to vector<1x512xf32>
      %111 = arith.addf %108, %110 : vector<1x512xf32>
      %c13_48 = arith.constant 13 : index
      %c0_49 = arith.constant 0 : index
      %112 = vector.load %arg6[%c13_48, %c0_49] : memref<16x512xf32, #tpu.memory_space<vmem>>, vector<1x512xf32>
      tpu.vector_store %arg6[%c13_48, %c0_49], %111 {strides = array<i32>} : memref<16x512xf32, #tpu.memory_space<vmem>>, vector<1x512xf32>,
      %c14 = arith.constant 14 : index
      %c0_50 = arith.constant 0 : index
      %113 = vector.load %arg6[%c14, %c0_50] : memref<16x512xf32, #tpu.memory_space<vmem>>, vector<1x512xf32>
      %cst_51 = arith.constant dense<0.000000e+00> : vector<512xf32>
      %114 = vector.multi_reduction <add>, %102, %cst_51 [0] : vector<1x512xf32> to vector<512xf32>
      %115 = vector.shape_cast %114 : vector<512xf32> to vector<1x512xf32>
      %116 = arith.addf %113, %115 : vector<1x512xf32>
      %c14_52 = arith.constant 14 : index
      %c0_53 = arith.constant 0 : index
      %117 = vector.load %arg6[%c14_52, %c0_53] : memref<16x512xf32, #tpu.memory_space<vmem>>, vector<1x512xf32>
      tpu.vector_store %arg6[%c14_52, %c0_53], %116 {strides = array<i32>} : memref<16x512xf32, #tpu.memory_space<vmem>>, vector<1x512xf32>,
    } else {
    }
    %c1_i32_5 = arith.constant 1 : i32
    %11 = arith.cmpi eq, %arg0, %c1_i32_5 : i32
    %c0_i32_6 = arith.constant 0 : i32
    %12 = arith.cmpi eq, %arg1, %c0_i32_6 : i32
    %13 = arith.andi %11, %12 : i1
    %14 = arith.extui %13 : i1 to i32
    %cst_7 = arith.constant 5.120000e+02 : f32
    %c0_i32_8 = arith.constant 0 : i32
    %15 = arith.cmpi ne, %14, %c0_i32_8 : i32
    scf.if %15 {
      %c0 = arith.constant 0 : index
      %c0_9 = arith.constant 0 : index
      %16 = vector.load %arg6[%c0, %c0_9] : memref<16x512xf32, #tpu.memory_space<vmem>>, vector<1x512xf32>
      %17 = vector.shape_cast %16 : vector<1x512xf32> to vector<1x1x512xf32>
      %cst_10 = arith.constant dense<0.000000e+00> : vector<1xf32>
      %18 = vector.multi_reduction <add>, %17, %cst_10 [1, 2] : vector<1x1x512xf32> to vector<1xf32>
      %19 = vector.shape_cast %18 : vector<1xf32> to vector<1x1x1xf32>
      %20 = vector.extract %19[0, 0, 0] : f32 from vector<1x1x1xf32>
      %c1 = arith.constant 1 : index
      %c0_11 = arith.constant 0 : index
      %21 = vector.load %arg6[%c1, %c0_11] : memref<16x512xf32, #tpu.memory_space<vmem>>, vector<1x512xf32>
      %22 = vector.shape_cast %21 : vector<1x512xf32> to vector<1x1x512xf32>
      %cst_12 = arith.constant dense<0.000000e+00> : vector<1xf32>
      %23 = vector.multi_reduction <add>, %22, %cst_12 [1, 2] : vector<1x1x512xf32> to vector<1xf32>
      %24 = vector.shape_cast %23 : vector<1xf32> to vector<1x1x1xf32>
      %25 = vector.extract %24[0, 0, 0] : f32 from vector<1x1x1xf32>
      %c2 = arith.constant 2 : index
      %c0_13 = arith.constant 0 : index
      %26 = vector.load %arg6[%c2, %c0_13] : memref<16x512xf32, #tpu.memory_space<vmem>>, vector<1x512xf32>
      %27 = vector.shape_cast %26 : vector<1x512xf32> to vector<1x1x512xf32>
      %cst_14 = arith.constant dense<0.000000e+00> : vector<1xf32>
      %28 = vector.multi_reduction <add>, %27, %cst_14 [1, 2] : vector<1x1x512xf32> to vector<1xf32>
      %29 = vector.shape_cast %28 : vector<1xf32> to vector<1x1x1xf32>
      %30 = vector.extract %29[0, 0, 0] : f32 from vector<1x1x1xf32>
      %c3 = arith.constant 3 : index
      %c0_15 = arith.constant 0 : index
      %31 = vector.load %arg6[%c3, %c0_15] : memref<16x512xf32, #tpu.memory_space<vmem>>, vector<1x512xf32>
      %32 = vector.shape_cast %31 : vector<1x512xf32> to vector<1x1x512xf32>
      %cst_16 = arith.constant dense<0.000000e+00> : vector<1xf32>
      %33 = vector.multi_reduction <add>, %32, %cst_16 [1, 2] : vector<1x1x512xf32> to vector<1xf32>
      %34 = vector.shape_cast %33 : vector<1xf32> to vector<1x1x1xf32>
      %35 = vector.extract %34[0, 0, 0] : f32 from vector<1x1x1xf32>
      %c4 = arith.constant 4 : index
      %c0_17 = arith.constant 0 : index
      %36 = vector.load %arg6[%c4, %c0_17] : memref<16x512xf32, #tpu.memory_space<vmem>>, vector<1x512xf32>
      %37 = vector.shape_cast %36 : vector<1x512xf32> to vector<1x1x512xf32>
      %cst_18 = arith.constant dense<0.000000e+00> : vector<1xf32>
      %38 = vector.multi_reduction <add>, %37, %cst_18 [1, 2] : vector<1x1x512xf32> to vector<1xf32>
      %39 = vector.shape_cast %38 : vector<1xf32> to vector<1x1x1xf32>
      %40 = vector.extract %39[0, 0, 0] : f32 from vector<1x1x1xf32>
      %c5 = arith.constant 5 : index
      %c0_19 = arith.constant 0 : index
      %41 = vector.load %arg6[%c5, %c0_19] : memref<16x512xf32, #tpu.memory_space<vmem>>, vector<1x512xf32>
      %42 = vector.shape_cast %41 : vector<1x512xf32> to vector<1x1x512xf32>
      %cst_20 = arith.constant dense<0.000000e+00> : vector<1xf32>
      %43 = vector.multi_reduction <add>, %42, %cst_20 [1, 2] : vector<1x1x512xf32> to vector<1xf32>
      %44 = vector.shape_cast %43 : vector<1xf32> to vector<1x1x1xf32>
      %45 = vector.extract %44[0, 0, 0] : f32 from vector<1x1x1xf32>
      %c6 = arith.constant 6 : index
      %c0_21 = arith.constant 0 : index
      %46 = vector.load %arg6[%c6, %c0_21] : memref<16x512xf32, #tpu.memory_space<vmem>>, vector<1x512xf32>
      %47 = vector.shape_cast %46 : vector<1x512xf32> to vector<1x1x512xf32>
      %cst_22 = arith.constant dense<0.000000e+00> : vector<1xf32>
      %48 = vector.multi_reduction <add>, %47, %cst_22 [1, 2] : vector<1x1x512xf32> to vector<1xf32>
      %49 = vector.shape_cast %48 : vector<1xf32> to vector<1x1x1xf32>
      %50 = vector.extract %49[0, 0, 0] : f32 from vector<1x1x1xf32>
      %c7 = arith.constant 7 : index
      %c0_23 = arith.constant 0 : index
      %51 = vector.load %arg6[%c7, %c0_23] : memref<16x512xf32, #tpu.memory_space<vmem>>, vector<1x512xf32>
      %52 = vector.shape_cast %51 : vector<1x512xf32> to vector<1x1x512xf32>
      %cst_24 = arith.constant dense<0xFF800000> : vector<1xf32>
      %53 = vector.multi_reduction <maximumf>, %52, %cst_24 [1, 2] : vector<1x1x512xf32> to vector<1xf32>
      %54 = vector.shape_cast %53 : vector<1xf32> to vector<1x1x1xf32>
      %55 = vector.extract %54[0, 0, 0] : f32 from vector<1x1x1xf32>
      %c8 = arith.constant 8 : index
      %c0_25 = arith.constant 0 : index
      %56 = vector.load %arg6[%c8, %c0_25] : memref<16x512xf32, #tpu.memory_space<vmem>>, vector<1x512xf32>
      %57 = vector.shape_cast %56 : vector<1x512xf32> to vector<1x1x512xf32>
      %cst_26 = arith.constant dense<0xFF800000> : vector<1xf32>
      %58 = vector.multi_reduction <maximumf>, %57, %cst_26 [1, 2] : vector<1x1x512xf32> to vector<1xf32>
      %59 = vector.shape_cast %58 : vector<1xf32> to vector<1x1x1xf32>
      %60 = vector.extract %59[0, 0, 0] : f32 from vector<1x1x1xf32>
      %c9 = arith.constant 9 : index
      %c0_27 = arith.constant 0 : index
      %61 = vector.load %arg6[%c9, %c0_27] : memref<16x512xf32, #tpu.memory_space<vmem>>, vector<1x512xf32>
      %62 = vector.shape_cast %61 : vector<1x512xf32> to vector<1x1x512xf32>
      %cst_28 = arith.constant dense<0xFF800000> : vector<1xf32>
      %63 = vector.multi_reduction <maximumf>, %62, %cst_28 [1, 2] : vector<1x1x512xf32> to vector<1xf32>
      %64 = vector.shape_cast %63 : vector<1xf32> to vector<1x1x1xf32>
      %65 = vector.extract %64[0, 0, 0] : f32 from vector<1x1x1xf32>
      %c12 = arith.constant 12 : index
      %c0_29 = arith.constant 0 : index
      %66 = vector.load %arg6[%c12, %c0_29] : memref<16x512xf32, #tpu.memory_space<vmem>>, vector<1x512xf32>
      %67 = vector.shape_cast %66 : vector<1x512xf32> to vector<1x1x512xf32>
      %cst_30 = arith.constant dense<0.000000e+00> : vector<1xf32>
      %68 = vector.multi_reduction <add>, %67, %cst_30 [1, 2] : vector<1x1x512xf32> to vector<1xf32>
      %69 = vector.shape_cast %68 : vector<1xf32> to vector<1x1x1xf32>
      %70 = vector.extract %69[0, 0, 0] : f32 from vector<1x1x1xf32>
      %c13 = arith.constant 13 : index
      %c0_31 = arith.constant 0 : index
      %71 = vector.load %arg6[%c13, %c0_31] : memref<16x512xf32, #tpu.memory_space<vmem>>, vector<1x512xf32>
      %72 = vector.shape_cast %71 : vector<1x512xf32> to vector<1x1x512xf32>
      %cst_32 = arith.constant dense<0.000000e+00> : vector<1xf32>
      %73 = vector.multi_reduction <add>, %72, %cst_32 [1, 2] : vector<1x1x512xf32> to vector<1xf32>
      %74 = vector.shape_cast %73 : vector<1xf32> to vector<1x1x1xf32>
      %75 = vector.extract %74[0, 0, 0] : f32 from vector<1x1x1xf32>
      %c14 = arith.constant 14 : index
      %c0_33 = arith.constant 0 : index
      %76 = vector.load %arg6[%c14, %c0_33] : memref<16x512xf32, #tpu.memory_space<vmem>>, vector<1x512xf32>
      %77 = vector.shape_cast %76 : vector<1x512xf32> to vector<1x1x512xf32>
      %cst_34 = arith.constant dense<0.000000e+00> : vector<1xf32>
      %78 = vector.multi_reduction <add>, %77, %cst_34 [1, 2] : vector<1x1x512xf32> to vector<1xf32>
      %79 = vector.shape_cast %78 : vector<1xf32> to vector<1x1x1xf32>
      %80 = vector.extract %79[0, 0, 0] : f32 from vector<1x1x1xf32>
      %cst_35 = arith.constant 1.000000e+00 : f32
      %81 = arith.divf %cst_35, %55 : f32
      %82 = arith.mulf %20, %81 : f32
      %cst_36 = arith.constant 1.000000e-10 : f32
      %83 = arith.addf %30, %cst_36 : f32
      %cst_37 = arith.constant 1.000000e+00 : f32
      %84 = arith.divf %cst_37, %83 : f32
      %cst_38 = arith.constant 1.000000e-10 : f32
      %85 = arith.addf %82, %cst_38 : f32
      %cst_39 = arith.constant 1.000000e+00 : f32
      %86 = arith.divf %cst_39, %85 : f32
      %cst_40 = arith.constant 1.000000e-01 : f32
      %87 = arith.cmpf ogt, %60, %cst_40 : f32
      %88 = arith.extui %87 : i1 to i32
      %89 = arith.sitofp %88 : i32 to f32
      %90 = arith.mulf %45, %84 : f32
      %91 = arith.mulf %90, %81 : f32
      %92 = arith.mulf %91, %86 : f32
      %93 = arith.mulf %30, %84 : f32
      %94 = arith.mulf %82, %86 : f32
      %95 = arith.mulf %35, %84 : f32
      %96 = arith.mulf %95, %84 : f32
      %cst_41 = arith.constant 1.000000e-10 : f32
      %97 = arith.addf %96, %cst_41 : f32
      %98 = arith.mulf %25, %81 : f32
      %99 = arith.mulf %98, %81 : f32
      %100 = arith.mulf %99, %86 : f32
      %101 = arith.mulf %100, %86 : f32
      %cst_42 = arith.constant 1.000000e-10 : f32
      %102 = arith.addf %101, %cst_42 : f32
      %103 = arith.mulf %93, %94 : f32
      %104 = arith.divf %103, %cst_7 : f32
      %105 = arith.subf %92, %104 : f32
      %106 = arith.mulf %93, %93 : f32
      %107 = arith.divf %106, %cst_7 : f32
      %108 = arith.subf %97, %107 : f32
      %109 = arith.mulf %94, %94 : f32
      %110 = arith.divf %109, %cst_7 : f32
      %111 = arith.subf %102, %110 : f32
      %112 = arith.mulf %108, %111 : f32
      %cst_43 = arith.constant -2.000000e+00 : f32
      %113 = arith.mulf %cst_43, %105 : f32
      %114 = math.rsqrt %112 : f32
      %115 = arith.mulf %113, %114 : f32
      %116 = arith.mulf %89, %115 : f32
      %cst_44 = arith.constant 1.000000e-01 : f32
      %117 = arith.cmpf ogt, %65, %cst_44 : f32
      %118 = arith.extui %117 : i1 to i32
      %119 = arith.sitofp %118 : i32 to f32
      %120 = arith.divf %82, %cst_7 : f32
      %121 = arith.mulf %80, %81 : f32
      %122 = arith.mulf %121, %81 : f32
      %cst_45 = arith.constant 1.000000e+00 : f32
      %123 = arith.subf %cst_7, %cst_45 : f32
      %124 = arith.divf %122, %123 : f32
      %125 = math.sqrt %124 : f32
      %126 = arith.mulf %50, %81 : f32
      %127 = arith.mulf %120, %40 : f32
      %128 = arith.subf %126, %127 : f32
      %cst_46 = arith.constant 1.000000e-10 : f32
      %129 = arith.addf %125, %cst_46 : f32
      %130 = arith.divf %128, %129 : f32
      %131 = arith.mulf %119, %130 : f32
      %132 = arith.divf %131, %40 : f32
      %cst_47 = arith.constant -1.000000e+00 : f32
      %133 = arith.mulf %cst_47, %132 : f32
      %134 = arith.addf %70, %116 : f32
      %135 = arith.addf %134, %133 : f32
      %136 = arith.addf %135, %75 : f32
      %c0_48 = arith.constant 0 : index
      %c0_49 = arith.constant 0 : index
      %137 = memref.load %arg5[%c0_48, %c0_49] : memref<1x1xf32, #tpu.memory_space<smem>>
      memref.store %136, %arg5[%c0_48, %c0_49] : memref<1x1xf32, #tpu.memory_space<smem>>
    } else {
    }
    return
  }
  func.func @transform_0(%arg0: i32, %arg1: i32) -> (i32, i32) {
    %c0_i32 = arith.constant 0 : i32
    %c0_i32_0 = arith.constant 0 : i32
    return %arg1, %c0_i32 : i32, i32
  }
  func.func @transform_1(%arg0: i32, %arg1: i32) -> (i32, i32) {
    %c0_i32 = arith.constant 0 : i32
    %c0_i32_0 = arith.constant 0 : i32
    return %arg1, %c0_i32 : i32, i32
  }
  func.func @transform_2(%arg0: i32, %arg1: i32) -> (i32, i32) {
    %c0_i32 = arith.constant 0 : i32
    %c0_i32_0 = arith.constant 0 : i32
    return %arg1, %c0_i32 : i32, i32
  }
  func.func @transform_3(%arg0: i32, %arg1: i32) -> (i32, i32) {
    %c0_i32 = arith.constant 0 : i32
    %c0_i32_0 = arith.constant 0 : i32
    %c0_i32_1 = arith.constant 0 : i32
    return %c0_i32, %c0_i32_0 : i32, i32
  }
}

</mosaic_0001>

<llo_original>
// kernel: tpu_custom_call.1
$region0: #{tpu_custom_call.1}
  #allocation0 [shape = 'u32[]', space=smem, size = 0x4, offset = 0x4, fixed_abs, tag = 'smem constant byte address 0x4 - core index']
  #allocation1 [shape = 'u32[72,128]{1,0:T(1,128)}', space=vmem, size = 0x9000, scoped, tag = 'internal scratch']
  #allocation2 [shape = 'f32[16,512]{1,0:T(8,128)}', space=vmem, size = 0x8000, scoped, tag = 'scratch operand']
  %s0 = inlined_call_operand.hbm [shape: f32[1,512], index: 0, kind: input, shape index: {}]
  %s1 = inlined_call_operand.hbm [shape: f32[1,512], index: 1, kind: input, shape index: {}]
  %s2 = inlined_call_operand.hbm [shape: f32[1,512], index: 2, kind: input, shape index: {}]
  %s3 = inlined_call_operand.hbm [shape: f32[1,1], index: 3, kind: output, shape index: {}]
  %s4 = sld [smem:[#allocation0]]
  $region73: #{tpu_custom_call.1} parent=0
    _
  %s6 = ssub.s32 1, %s4
  %s7 = scalar_select 0, %s6, %s4
  $region1: #{tpu_custom_call.1} parent=0
    #allocation3 [shape = 'u8[2048]{0}', space=vmem, size = 0x800, scoped, tag = 'input window, operand 0, single buffered']
    #allocation4 [shape = 's32[2]{0}', space=sflag, size = 0x8, scoped, tag = 'scoped memory for tpu_custom_call.1']
    #allocation5 [shape = 's32[2]{0}', space=sflag, size = 0x8, scoped, tag = 'scoped memory for tpu_custom_call.1']
    #allocation6 [shape = 'u8[2048]{0}', space=vmem, size = 0x800, scoped, tag = 'input window, operand 1, single buffered']
    #allocation7 [shape = 's32[1]{0}', space=sflag, size = 0x4, scoped, tag = 'scoped memory for tpu_custom_call.1']
    #allocation8 [shape = 'u8[2048]{0}', space=vmem, size = 0x800, scoped, tag = 'input window, operand 2, single buffered']
    #allocation9 [shape = 'u8[512]{0}', space=smem, size = 0x200, scoped, tag = 'output window, operand 0, single buffered']
    %8 = vsyncpa [#allocation4], 0
    %9 = vsyncpa [#allocation7], 0
    %10 = vsyncpa [#allocation5], 0
    loop: start=0, step=1, limit=4
    $region2: #{tpu_custom_call.1} parent=1 // loop_pre_header
      _
    $region3: #{tpu_custom_call.1} parent=1 // loop_header
      %s12 = sphi 0, %s16
      %p13 = scmp.ge.s32.totalorder %s12, 4
      %s19 = sphi 0, %s31
      %s20 = sphi 0, %s27
      %s21 = sphi 0, %s19
      %s22 = sphi 0, %s20
      %s23 = sphi 0, %s21
      %s24 = sphi 0, %s22
      %s34 = sphi 0, %s36
      %s37 = sphi 0, %s34
      %s38 = sphi 0, %s37
      %s54 = sphi 0, %s38
      %s60 = sphi 0, %s62
      %s63 = sphi 0, %s60
      %s64 = sphi 0, %s63
      %s80 = sphi 0, %s64
      %s86 = sphi 0, %s88
      %s89 = sphi 0, %s86
      %s90 = sphi 0, %s89
      %s106 = sphi 0, %s90
      %s110 = sphi 0, %s110
      %s112 = sphi 0, %s110
      %s113 = sphi 0, %s112
      %s127 = sphi 0, %s113
    $region4: #{tpu_custom_call.1} parent=1 // loop_header_branch
      %15 = sbr.rel (%p13) target = $region8
    $region5: #{tpu_custom_call.1} parent=1 // loop_body
      %s17 = ssub.s32 %s12, 1
      %s18 = ssub.s32 %s12, 2
      %s25 = sadd.s32 1, %s20
      %p26 = scmp.ge.s32.totalorder %s25, 1
      %s27 = scalar_select %p26, 0, %s25
      %s28 = sadd.s32 1, %s19
      %s29 = scalar_select %p26, %s28, %s19
      %p30 = scmp.ge.s32.totalorder %s29, 2
      %s31 = scalar_select %p30, 0, %s29
      %s32 = ssub.s32 %s20, %s27
      %p33 = scmp.eq.s32.totalorder %s32, 0
      %s35 = sadd.s32 %s34, 1
      %s36 = scalar_select %p33, %s34, %s35
      %p39 = pneg %p33
      %p40 = scmp.eq.s32.totalorder %s12, 1
      %p41 = por %p39, %p40
      %p42 = scmp.ne.s32.totalorder %s34, %s37
      %p43 = scmp.eq.s32.totalorder %s12, 0
      %p44 = por %p42, %p43
      %p45 = scmp.ne.s32.totalorder %s34, %s37
      %p46 = scmp.eq.s32.totalorder %s17, 1
      %p47 = por %p45, %p46
      %p48 = scmp.ne.s32.totalorder %s37, %s38
      %p49 = scmp.eq.s32.totalorder %s17, 0
      %p50 = por %p48, %p49
      %p51 = scmp.ne.s32.totalorder %s37, %s38
      %p52 = scmp.eq.s32.totalorder %s18, 1
      %p53 = por %p51, %p52
      %p55 = scmp.ne.s32.totalorder %s38, %s54
      %p56 = scmp.eq.s32.totalorder %s18, 0
      %p57 = por %p55, %p56
      %s58 = ssub.s32 %s20, %s27
      %p59 = scmp.eq.s32.totalorder %s58, 0
      %s61 = sadd.s32 %s60, 1
      %s62 = scalar_select %p59, %s60, %s61
      %p65 = pneg %p59
      %p66 = scmp.eq.s32.totalorder %s12, 1
      %p67 = por %p65, %p66
      %p68 = scmp.ne.s32.totalorder %s60, %s63
      %p69 = scmp.eq.s32.totalorder %s12, 0
      %p70 = por %p68, %p69
      %p71 = scmp.ne.s32.totalorder %s60, %s63
      %p72 = scmp.eq.s32.totalorder %s17, 1
      %p73 = por %p71, %p72
      %p74 = scmp.ne.s32.totalorder %s63, %s64
      %p75 = scmp.eq.s32.totalorder %s17, 0
      %p76 = por %p74, %p75
      %p77 = scmp.ne.s32.totalorder %s63, %s64
      %p78 = scmp.eq.s32.totalorder %s18, 1
      %p79 = por %p77, %p78
      %p81 = scmp.ne.s32.totalorder %s64, %s80
      %p82 = scmp.eq.s32.totalorder %s18, 0
      %p83 = por %p81, %p82
      %s84 = ssub.s32 %s20, %s27
      %p85 = scmp.eq.s32.totalorder %s84, 0
      %s87 = sadd.s32 %s86, 1
      %s88 = scalar_select %p85, %s86, %s87
      %p91 = pneg %p85
      %p92 = scmp.eq.s32.totalorder %s12, 1
      %p93 = por %p91, %p92
      %p94 = scmp.ne.s32.totalorder %s86, %s89
      %p95 = scmp.eq.s32.totalorder %s12, 0
      %p96 = por %p94, %p95
      %p97 = scmp.ne.s32.totalorder %s86, %s89
      %p98 = scmp.eq.s32.totalorder %s17, 1
      %p99 = por %p97, %p98
      %p100 = scmp.ne.s32.totalorder %s89, %s90
      %p101 = scmp.eq.s32.totalorder %s17, 0
      %p102 = por %p100, %p101
      %p103 = scmp.ne.s32.totalorder %s89, %s90
      %p104 = scmp.eq.s32.totalorder %s18, 1
      %p105 = por %p103, %p104
      %p107 = scmp.ne.s32.totalorder %s90, %s106
      %p108 = scmp.eq.s32.totalorder %s18, 0
      %p109 = por %p107, %p108
      %s111 = sadd.s32 %s110, 1
      %p114 = scmp.eq.s32.totalorder %s12, 1
      %p115 = scmp.ne.s32.totalorder %s110, %s112
      %p116 = scmp.eq.s32.totalorder %s12, 0
      %p117 = por %p115, %p116
      %p118 = scmp.ne.s32.totalorder %s110, %s112
      %p119 = scmp.eq.s32.totalorder %s17, 1
      %p120 = por %p118, %p119
      %p121 = scmp.ne.s32.totalorder %s112, %s113
      %p122 = scmp.eq.s32.totalorder %s17, 0
      %p123 = por %p121, %p122
      %p124 = scmp.ne.s32.totalorder %s112, %s113
      %p125 = scmp.eq.s32.totalorder %s18, 1
      %p126 = por %p124, %p125
      %p128 = scmp.ne.s32.totalorder %s113, %s127
      %p129 = scmp.eq.s32.totalorder %s18, 0
      %p130 = por %p128, %p129
      %p131 = scmp.le.s32.totalorder 1, %s12
      %p132 = scmp.lt.s32.totalorder %s12, 3
      %p133 = pnand %p131, %p132
      %p134 = pneg %p133
      // Predicated region
      $region9: #{tpu_custom_call.1} parent=5 // pred_check
        _
      $region10: #{tpu_custom_call.1} parent=5 // pred_check_branch
        %136 = sbr.rel (%p133) target = $region12
      $region11: #{tpu_custom_call.1} parent=5 // pred_region
        %s137 = ssub.s32 %s12, 1
        // Predicated region
        $region13: #{tpu_custom_call.1} parent=11 // pred_check
          %p138 = pneg %p50
        $region14: #{tpu_custom_call.1} parent=11 // pred_check_branch
          %140 = sbr.rel (%p138) target = $region16
        $region15: #{tpu_custom_call.1} parent=11 // pred_region
          %142 = vsyncadd [#allocation4], 0
          %s143 = smul.addr %s22, 4
          %s144 = scalar_lea.hbm %s0, %s143
          %s146 = sshll.u32 %s144, 4
          %s147 = int_to_ptr.hbm [resolvable:$true] %s146
          %s148 = sshll.u32 [#allocation3], 4
          %s149 = int_to_ptr.vmem [resolvable:$true] %s148
          %151 = dma.hbm_to_vmem [thread:$0]  %s147, 64, %s149, [#allocation4]
        $region16: #{tpu_custom_call.1} parent=11 // pred_fallthru
          _
        // Predicated region
        $region17: #{tpu_custom_call.1} parent=11 // pred_check
          %p152 = pneg %p76
        $region18: #{tpu_custom_call.1} parent=11 // pred_check_branch
          %154 = sbr.rel (%p152) target = $region20
        $region19: #{tpu_custom_call.1} parent=11 // pred_region
          %156 = vsyncadd [#allocation7], 0
          %s157 = smul.addr %s22, 4
          %s158 = scalar_lea.hbm %s1, %s157
          %s160 = sshll.u32 %s158, 4
          %s161 = int_to_ptr.hbm [resolvable:$true] %s160
          %s162 = sshll.u32 [#allocation6], 4
          %s163 = int_to_ptr.vmem [resolvable:$true] %s162
          %165 = dma.hbm_to_vmem [thread:$0]  %s161, 64, %s163, [#allocation7]
        $region20: #{tpu_custom_call.1} parent=11 // pred_fallthru
          _
        // Predicated region
        $region21: #{tpu_custom_call.1} parent=11 // pred_check
          %p166 = pneg %p102
        $region22: #{tpu_custom_call.1} parent=11 // pred_check_branch
          %168 = sbr.rel (%p166) target = $region24
        $region23: #{tpu_custom_call.1} parent=11 // pred_region
          %170 = vsyncadd [#allocation7], 0
          %s171 = smul.addr %s22, 4
          %s172 = scalar_lea.hbm %s2, %s171
          %s174 = sshll.u32 %s172, 4
          %s175 = int_to_ptr.hbm [resolvable:$true] %s174
          %s176 = sshll.u32 [#allocation8], 4
          %s177 = int_to_ptr.vmem [resolvable:$true] %s176
          %179 = dma.hbm_to_vmem [thread:$0]  %s175, 64, %s177, [#allocation7]
        $region24: #{tpu_custom_call.1} parent=11 // pred_fallthru
          _
      $region12: #{tpu_custom_call.1} parent=5 // pred_fallthru
        _
      %p180 = scmp.lt.s32.totalorder %s12, 2
      // Predicated region
      $region25: #{tpu_custom_call.1} parent=5 // pred_check
        %p181 = pneg %p180
      $region26: #{tpu_custom_call.1} parent=5 // pred_check_branch
        %183 = sbr.rel (%p181) target = $region28
      $region27: #{tpu_custom_call.1} parent=5 // pred_region
        _
      $region28: #{tpu_custom_call.1} parent=5 // pred_fallthru
        _
      %p184 = scmp.le.s32.totalorder 1, %s12
      %p185 = scmp.lt.s32.totalorder %s12, 3
      %p186 = pnand %p184, %p185
      %p187 = pneg %p186
      // Predicated region
      $region29: #{tpu_custom_call.1} parent=5 // pred_check
        _
      $region30: #{tpu_custom_call.1} parent=5 // pred_check_branch
        %189 = sbr.rel (%p186) target = $region32
      $region31: #{tpu_custom_call.1} parent=5 // pred_region
        %s190 = ssub.s32 %s12, 1
        // Predicated region
        $region33: #{tpu_custom_call.1} parent=31 // pred_check
          %p191 = pneg %p50
        $region34: #{tpu_custom_call.1} parent=31 // pred_check_branch
          %193 = sbr.rel (%p191) target = $region36
        $region35: #{tpu_custom_call.1} parent=31 // pred_region
          %195 = dma.done [#allocation4], 64
        $region36: #{tpu_custom_call.1} parent=31 // pred_fallthru
          _
        // Predicated region
        $region37: #{tpu_custom_call.1} parent=31 // pred_check
          %p196 = pneg %p76
        $region38: #{tpu_custom_call.1} parent=31 // pred_check_branch
          %198 = sbr.rel (%p196) target = $region40
        $region39: #{tpu_custom_call.1} parent=31 // pred_region
          %200 = dma.done [#allocation7], 64
        $region40: #{tpu_custom_call.1} parent=31 // pred_fallthru
          _
        // Predicated region
        $region41: #{tpu_custom_call.1} parent=31 // pred_check
          %p201 = pneg %p102
        $region42: #{tpu_custom_call.1} parent=31 // pred_check_branch
          %203 = sbr.rel (%p201) target = $region44
        $region43: #{tpu_custom_call.1} parent=31 // pred_region
          %205 = dma.done [#allocation7], 64
        $region44: #{tpu_custom_call.1} parent=31 // pred_fallthru
          _
        %p206 = pneg %p50
        %p207 = pneg %p47
        %p208 = pneg %p76
        %p209 = pneg %p73
        %p210 = pneg %p102
        %p211 = pneg %p99
        %p212 = pneg %p123
        %p213 = pneg %p120
        %p214 = scmp.eq.s32.totalorder %s21, 0
        %p215 = scmp.eq.s32.totalorder %s22, 0
        %p216 = pnand %p214, %p215
        %p217 = pneg %p216
        // Predicated region
        $region45: #{tpu_custom_call.1} parent=31 // pred_check
          _
        $region46: #{tpu_custom_call.1} parent=31 // pred_check_branch
          %219 = sbr.rel (%p216) target = $region48
        $region47: #{tpu_custom_call.1} parent=31 // pred_region
          %220 = vst [vmem:[#allocation2] sm:$0xff] 0.0
          %221 = vst [vmem:[#allocation2 + $0x8] sm:$0xff] 0.0
          %222 = vst [vmem:[#allocation2 + $0x10] sm:$0xff] 0.0
          %223 = vst [vmem:[#allocation2 + $0x18] sm:$0xff] 0.0
          %224 = vst [vmem:[#allocation2 + $0x20] sm:$0xff] 0.0
          %225 = vst [vmem:[#allocation2 + $0x28] sm:$0xff] 0.0
          %226 = vst [vmem:[#allocation2 + $0x30] sm:$0xff] 0.0
          %227 = vst [vmem:[#allocation2 + $0x38] sm:$0xff] 0.0
          %228 = vst [vmem:[#allocation2] sm:$0x80] -inf
          %229 = vst [vmem:[#allocation2 + $0x8] sm:$0x80] -inf
          %230 = vst [vmem:[#allocation2 + $0x10] sm:$0x80] -inf
          %231 = vst [vmem:[#allocation2 + $0x18] sm:$0x80] -inf
          %232 = vst [vmem:[#allocation2 + $0x20] sm:$0xf] -inf
          %233 = vst [vmem:[#allocation2 + $0x28] sm:$0xf] -inf
          %234 = vst [vmem:[#allocation2 + $0x30] sm:$0xf] -inf
          %235 = vst [vmem:[#allocation2 + $0x38] sm:$0xf] -inf
        $region48: #{tpu_custom_call.1} parent=31 // pred_fallthru
          _
        // Predicated region
        $region49: #{tpu_custom_call.1} parent=31 // pred_check
          %p236 = pneg %p214
        $region50: #{tpu_custom_call.1} parent=31 // pred_check_branch
          %238 = sbr.rel (%p236) target = $region52
        $region51: #{tpu_custom_call.1} parent=31 // pred_region
          %v239 = vld [vmem:[#allocation3] sm:$0xf]
          %v240 = vld [vmem:[#allocation6] sm:$0xf]
          %v241 = vld [vmem:[#allocation8] sm:$0xf]
          %v242 = vmul.f32 %v241, %v241
          %v243 = vmul.f32 %v239, %v239
          %v244 = vmul.f32 %v239, %v241
          %v245 = vmul.f32 %v240, %v241
          %v246 = vld [vmem:[#allocation2] ss:$8 sm:$0xf]
          %v247 = vadd.f32 %v241, 0.0
          %v248 = vadd.f32 %v246, %v247
          %v249 = vlaneseq
          %vm250 = vcmp.ge.s32.totalorder %v249, 0
          %vm251 = vcmp.lt.s32.totalorder %v249, 512
          %vm252 = vmand %vm250, %vm251
          %253 = vst.msk [vmem:[#allocation2] ss:$8 sm:$0xf] %vm252, %v248
          %254 = vst.msk [vmem:[#allocation2] ss:$8 sm:$0x0] %vm252, %v248
          %s255 = scalar_lea.vmem [#allocation2], 1
          %v256 = vld [vmem:[%s255] ss:$8 sm:$0xf]
          %v257 = vadd.f32 %v242, 0.0
          %v258 = vadd.f32 %v256, %v257
          %259 = vst.msk [vmem:[%s255] ss:$8 sm:$0xf] %vm252, %v258
          %260 = vst.msk [vmem:[%s255] ss:$8 sm:$0x0] %vm252, %v258
          %s261 = scalar_lea.vmem [#allocation2], 2
          %v262 = vld [vmem:[%s261] ss:$8 sm:$0xf]
          %v263 = vadd.f32 %v239, 0.0
          %v264 = vadd.f32 %v262, %v263
          %265 = vst.msk [vmem:[%s261] ss:$8 sm:$0xf] %vm252, %v264
          %266 = vst.msk [vmem:[%s261] ss:$8 sm:$0x0] %vm252, %v264
          %s267 = scalar_lea.vmem [#allocation2], 3
          %v268 = vld [vmem:[%s267] ss:$8 sm:$0xf]
          %v269 = vadd.f32 %v243, 0.0
          %v270 = vadd.f32 %v268, %v269
          %271 = vst.msk [vmem:[%s267] ss:$8 sm:$0xf] %vm252, %v270
          %272 = vst.msk [vmem:[%s267] ss:$8 sm:$0x0] %vm252, %v270
          %s273 = scalar_lea.vmem [#allocation2], 4
          %v274 = vld [vmem:[%s273] ss:$8 sm:$0xf]
          %v275 = vadd.f32 %v240, 0.0
          %v276 = vadd.f32 %v274, %v275
          %277 = vst.msk [vmem:[%s273] ss:$8 sm:$0xf] %vm252, %v276
          %278 = vst.msk [vmem:[%s273] ss:$8 sm:$0x0] %vm252, %v276
          %s279 = scalar_lea.vmem [#allocation2], 5
          %v280 = vld [vmem:[%s279] ss:$8 sm:$0xf]
          %v281 = vadd.f32 %v244, 0.0
          %v282 = vadd.f32 %v280, %v281
          %283 = vst.msk [vmem:[%s279] ss:$8 sm:$0xf] %vm252, %v282
          %284 = vst.msk [vmem:[%s279] ss:$8 sm:$0x0] %vm252, %v282
          %s285 = scalar_lea.vmem [#allocation2], 6
          %v286 = vld [vmem:[%s285] ss:$8 sm:$0xf]
          %v287 = vadd.f32 %v245, 0.0
          %v288 = vadd.f32 %v286, %v287
          %289 = vst.msk [vmem:[%s285] ss:$8 sm:$0xf] %vm252, %v288
          %290 = vst.msk [vmem:[%s285] ss:$8 sm:$0x0] %vm252, %v288
          %v291 = vsub.f32 0.0, %v241
          %v292 = vsub.f32 0.0, %v239
          %s293 = scalar_lea.vmem [#allocation2], 7
          %v294 = vld [vmem:[%s293] ss:$8 sm:$0xf]
          %v295 = vmax.f32 %v294, %v241
          %296 = vst.msk [vmem:[%s293] ss:$8 sm:$0xf] %vm252, %v295
          %297 = vst.msk [vmem:[%s293] ss:$8 sm:$0x0] %vm252, %v295
          %s298 = scalar_lea.vmem [#allocation2], 32
          %v299 = vld [vmem:[%s298] ss:$8 sm:$0xf]
          %v300 = vmax.f32 %v299, %v239
          %301 = vst.msk [vmem:[%s298] ss:$8 sm:$0xf] %vm252, %v300
          %302 = vst.msk [vmem:[%s298] ss:$8 sm:$0x0] %vm252, %v300
          %s303 = scalar_lea.vmem [#allocation2], 33
          %v304 = vld [vmem:[%s303] ss:$8 sm:$0xf]
          %v305 = vmax.f32 %v304, %v240
          %306 = vst.msk [vmem:[%s303] ss:$8 sm:$0xf] %vm252, %v305
          %307 = vst.msk [vmem:[%s303] ss:$8 sm:$0x0] %vm252, %v305
          %s308 = scalar_lea.vmem [#allocation2], 34
          %v309 = vld [vmem:[%s308] ss:$8 sm:$0xf]
          %v310 = vmax.f32 %v309, %v291
          %311 = vst.msk [vmem:[%s308] ss:$8 sm:$0xf] %vm252, %v310
          %312 = vst.msk [vmem:[%s308] ss:$8 sm:$0x0] %vm252, %v310
          %s313 = scalar_lea.vmem [#allocation2], 35
          %v314 = vld [vmem:[%s313] ss:$8 sm:$0xf]
          %v315 = vmax.f32 %v314, %v292
          %316 = vst.msk [vmem:[%s313] ss:$8 sm:$0xf] %vm252, %v315
          %317 = vst.msk [vmem:[%s313] ss:$8 sm:$0x0] %vm252, %v315
        $region52: #{tpu_custom_call.1} parent=31 // pred_fallthru
          _
        %p318 = scmp.eq.s32.totalorder %s21, 1
        // Predicated region
        $region53: #{tpu_custom_call.1} parent=31 // pred_check
          %p319 = pneg %p318
        $region54: #{tpu_custom_call.1} parent=31 // pred_check_branch
          %321 = sbr.rel (%p319) target = $region56
        $region55: #{tpu_custom_call.1} parent=31 // pred_region
          %v322 = vld [vmem:[#allocation3] sm:$0xf]
          %v323 = vld [vmem:[#allocation8] sm:$0xf]
          %v324 = vld [vmem:[#allocation2] ss:$8 sm:$0xf]
          %v326 = vperm.slane %v324, 0
          %v327 = vperm.slane %v324, 1
          %v328 = vperm.slane %v324, 2
          %v329 = vperm.slane %v324, 3
          %vm334 = vcmask 1040384
          %v335 = vsel %vm334, %v326, 0.0
          %v336 = vsel %vm334, %v327, 0.0
          %v337 = vadd.f32 %v335, %v336
          %v338 = vsel %vm334, %v328, 0.0
          %v339 = vadd.f32 %v337, %v338
          %v340 = vsel %vm334, %v329, 0.0
          %v341 = vadd.f32 %v339, %v340
          %342 = vadd.xlane.f32.xlu0 %v341
          %v343 = vpop.xlane.xlu0 %342
          %v344 = vrot.slane %v343, 4
          %v345 = vadd.f32 %v343, %v344
          %v346 = vrot.slane %v345, 2
          %v347 = vadd.f32 %v345, %v346
          %v348 = vrot.slane %v347, 1
          %v349 = vadd.f32 %v347, %v348
          %s350 = vtos %v349
          %s351 = scalar_lea.vmem [#allocation2], 2
          %v352 = vld [vmem:[%s351] ss:$8 sm:$0xf]
          %v354 = vperm.slane %v352, 0
          %v355 = vperm.slane %v352, 1
          %v356 = vperm.slane %v352, 2
          %v357 = vperm.slane %v352, 3
          %v362 = vsel %vm334, %v354, 0.0
          %v363 = vsel %vm334, %v355, 0.0
          %v364 = vadd.f32 %v362, %v363
          %v365 = vsel %vm334, %v356, 0.0
          %v366 = vadd.f32 %v364, %v365
          %v367 = vsel %vm334, %v357, 0.0
          %v368 = vadd.f32 %v366, %v367
          %369 = vadd.xlane.f32.xlu0 %v368
          %v370 = vpop.xlane.xlu0 %369
          %v371 = vrot.slane %v370, 4
          %v372 = vadd.f32 %v370, %v371
          %v373 = vrot.slane %v372, 2
          %v374 = vadd.f32 %v372, %v373
          %v375 = vrot.slane %v374, 1
          %v376 = vadd.f32 %v374, %v375
          %s377 = vtos %v376
          %s378 = scalar_lea.vmem [#allocation2], 7
          %v379 = vld [vmem:[%s378] ss:$8 sm:$0xf]
          %v381 = vperm.slane %v379, 0
          %v382 = vperm.slane %v379, 1
          %v383 = vperm.slane %v379, 2
          %v384 = vperm.slane %v379, 3
          %v389 = vsel %vm334, %v381, -inf
          %v390 = vsel %vm334, %v382, -inf
          %v391 = vsel %vm334, %v383, -inf
          %v392 = vsel %vm334, %v384, -inf
          %v393 = vmax.f32 %v389, %v390
          %v394 = vmax.f32 %v391, %v392
          %v395 = vmax.f32 %v393, %v394
          %396 = vmax.xlane.f32.xlu0 %v395
          %v397 = vpop.xlane.xlu0 %396
          %v398 = vrot.slane %v397, 4
          %v399 = vmax.f32 %v397, %v398
          %v400 = vrot.slane %v399, 2
          %v401 = vmax.f32 %v399, %v400
          %v402 = vrot.slane %v401, 1
          %v403 = vmax.f32 %v401, %v402
          %s404 = vtos %v403
          %s405 = scalar_lea.vmem [#allocation2], 32
          %v406 = vld [vmem:[%s405] ss:$8 sm:$0xf]
          %v408 = vperm.slane %v406, 0
          %v409 = vperm.slane %v406, 1
          %v410 = vperm.slane %v406, 2
          %v411 = vperm.slane %v406, 3
          %v416 = vsel %vm334, %v408, -inf
          %v417 = vsel %vm334, %v409, -inf
          %v418 = vsel %vm334, %v410, -inf
          %v419 = vsel %vm334, %v411, -inf
          %v420 = vmax.f32 %v416, %v417
          %v421 = vmax.f32 %v418, %v419
          %v422 = vmax.f32 %v420, %v421
          %423 = vmax.xlane.f32.xlu0 %v422
          %v424 = vpop.xlane.xlu0 %423
          %v425 = vrot.slane %v424, 4
          %v426 = vmax.f32 %v424, %v425
          %v427 = vrot.slane %v426, 2
          %v428 = vmax.f32 %v426, %v427
          %v429 = vrot.slane %v428, 1
          %v430 = vmax.f32 %v428, %v429
          %s431 = vtos %v430
          %s432 = scalar_lea.vmem [#allocation2], 34
          %v433 = vld [vmem:[%s432] ss:$8 sm:$0xf]
          %v435 = vperm.slane %v433, 0
          %v436 = vperm.slane %v433, 1
          %v437 = vperm.slane %v433, 2
          %v438 = vperm.slane %v433, 3
          %v443 = vsel %vm334, %v435, -inf
          %v444 = vsel %vm334, %v436, -inf
          %v445 = vsel %vm334, %v437, -inf
          %v446 = vsel %vm334, %v438, -inf
          %v447 = vmax.f32 %v443, %v444
          %v448 = vmax.f32 %v445, %v446
          %v449 = vmax.f32 %v447, %v448
          %450 = vmax.xlane.f32.xlu0 %v449
          %v451 = vpop.xlane.xlu0 %450
          %v452 = vrot.slane %v451, 4
          %v453 = vmax.f32 %v451, %v452
          %v454 = vrot.slane %v453, 2
          %v455 = vmax.f32 %v453, %v454
          %v456 = vrot.slane %v455, 1
          %v457 = vmax.f32 %v455, %v456
          %s458 = vtos %v457
          %s459 = ssub.f32 0.0, %s458
          %s460 = scalar_lea.vmem [#allocation2], 35
          %v461 = vld [vmem:[%s460] ss:$8 sm:$0xf]
          %v463 = vperm.slane %v461, 0
          %v464 = vperm.slane %v461, 1
          %v465 = vperm.slane %v461, 2
          %v466 = vperm.slane %v461, 3
          %v471 = vsel %vm334, %v463, -inf
          %v472 = vsel %vm334, %v464, -inf
          %v473 = vsel %vm334, %v465, -inf
          %v474 = vsel %vm334, %v466, -inf
          %v475 = vmax.f32 %v471, %v472
          %v476 = vmax.f32 %v473, %v474
          %v477 = vmax.f32 %v475, %v476
          %478 = vmax.xlane.f32.xlu0 %v477
          %v479 = vpop.xlane.xlu0 %478
          %v480 = vrot.slane %v479, 4
          %v481 = vmax.f32 %v479, %v480
          %v482 = vrot.slane %v481, 2
          %v483 = vmax.f32 %v481, %v482
          %v484 = vrot.slane %v483, 1
          %v485 = vmax.f32 %v483, %v484
          %s486 = vtos %v485
          %s487 = ssub.f32 0.0, %s486
          %v488 = vstv %s404
          %v489 = vrcp.pop %v488
          %v490 = vmul.f32 %v488, %v489
          %v491 = vsub.f32 1.0, %v490
          %v492 = vmul.f32 %v489, %v491
          %v493 = vadd.f32 %v489, %v492
          %vm494 = vweird.f32 %v488
          %vm495 = vweird.f32 %v489
          %vm496 = vmor %vm494, %vm495
          %v497 = vsel %vm496, %v489, %v493
          %v498 = vand.u32 2147483647, %v488
          %vm499 = vcmp.eq.f32.partialorder %v498, 8.507059e+37
          %v500 = vand.u32 %v488, 2147483648
          %v501 = vor.u32 1.1754944e-38, %v500
          %v502 = vsel %vm499, %v501, %v497
          %s503 = vtos %v502
          %s504 = smul.f32 %s350, %s503
          %s505 = sadd.f32 %s377, 1e-10
          %v506 = vstv %s505
          %v507 = vrcp.pop %v506
          %v508 = vmul.f32 %v506, %v507
          %v509 = vsub.f32 1.0, %v508
          %v510 = vmul.f32 %v507, %v509
          %v511 = vadd.f32 %v507, %v510
          %vm512 = vweird.f32 %v506
          %vm513 = vweird.f32 %v507
          %vm514 = vmor %vm512, %vm513
          %v515 = vsel %vm514, %v507, %v511
          %v516 = vand.u32 2147483647, %v506
          %vm517 = vcmp.eq.f32.partialorder %v516, 8.507059e+37
          %v518 = vand.u32 %v506, 2147483648
          %v519 = vor.u32 1.1754944e-38, %v518
          %v520 = vsel %vm517, %v519, %v515
          %s521 = vtos %v520
          %s522 = sadd.f32 %s504, 1e-10
          %v523 = vstv %s522
          %v524 = vrcp.pop %v523
          %v525 = vmul.f32 %v523, %v524
          %v526 = vsub.f32 1.0, %v525
          %v527 = vmul.f32 %v524, %v526
          %v528 = vadd.f32 %v524, %v527
          %vm529 = vweird.f32 %v523
          %vm530 = vweird.f32 %v524
          %vm531 = vmor %vm529, %vm530
          %v532 = vsel %vm531, %v524, %v528
          %v533 = vand.u32 2147483647, %v523
          %vm534 = vcmp.eq.f32.partialorder %v533, 8.507059e+37
          %v535 = vand.u32 %v523, 2147483648
          %v536 = vor.u32 1.1754944e-38, %v535
          %v537 = vsel %vm534, %v536, %v532
          %s538 = vtos %v537
          %s539 = smul.f32 %s503, %s538
          %v540 = vstv %s521
          %v541 = vmul.f32 %v322, %v540
          %v542 = vstv %s539
          %v543 = vmul.f32 %v323, %v542
          %vm544 = vcmp.gt.f32.partialorder %v322, 0.1
          %v545 = vsel %vm544, 1, 0
          %v546 = vcvt.s32.f32 %v545
          %v547 = vmul.f32 %v546, %v541
          %v548 = vadd.f32 %v543, 1e-10
          %v549 = vrcp.pop %v548
          %v550 = vmul.f32 %v548, %v549
          %v551 = vsub.f32 1.0, %v550
          %v552 = vmul.f32 %v549, %v551
          %v553 = vadd.f32 %v549, %v552
          %vm554 = vweird.f32 %v548
          %vm555 = vweird.f32 %v549
          %vm556 = vmor %vm554, %vm555
          %v557 = vsel %vm556, %v549, %v553
          %v558 = vand.u32 2147483647, %v548
          %vm559 = vcmp.eq.f32.partialorder %v558, 8.507059e+37
          %v560 = vand.u32 %v548, 2147483648
          %v561 = vor.u32 1.1754944e-38, %v560
          %v562 = vsel %vm559, %v561, %v557
          %v563 = vmul.f32 %v541, %v562
          %v564 = vadd.f32 %v563, 1e-10
          %v565 = vlog2.pop %v564
          %v566 = vmul.f32 %v565, 0.6931472
          %v567 = vmul.f32 %v547, %v566
          %s568 = ssub.f32 %s404, %s459
          %s569 = ssub.f32 %s431, %s487
          %s570 = smul.f32 %s459, 512.0
          %s571 = ssub.f32 %s350, %s570
          %s572 = sadd.f32 %s568, 1e-10
          %v573 = vstv %s572
          %v574 = vrcp.pop %v573
          %v575 = vmul.f32 %v573, %v574
          %v576 = vsub.f32 1.0, %v575
          %v577 = vmul.f32 %v574, %v576
          %v578 = vadd.f32 %v574, %v577
          %vm579 = vweird.f32 %v573
          %vm580 = vweird.f32 %v574
          %vm581 = vmor %vm579, %vm580
          %v582 = vsel %vm581, %v574, %v578
          %v583 = vand.u32 2147483647, %v573
          %vm584 = vcmp.eq.f32.partialorder %v583, 8.507059e+37
          %v585 = vand.u32 %v573, 2147483648
          %v586 = vor.u32 1.1754944e-38, %v585
          %v587 = vsel %vm584, %v586, %v582
          %s588 = vtos %v587
          %s589 = smul.f32 %s571, %s588
          %s590 = smul.f32 %s487, 512.0
          %s591 = ssub.f32 %s377, %s590
          %s592 = sadd.f32 %s569, 1e-10
          %v593 = vstv %s592
          %v594 = vrcp.pop %v593
          %v595 = vmul.f32 %v593, %v594
          %v596 = vsub.f32 1.0, %v595
          %v597 = vmul.f32 %v594, %v596
          %v598 = vadd.f32 %v594, %v597
          %vm599 = vweird.f32 %v593
          %vm600 = vweird.f32 %v594
          %vm601 = vmor %vm599, %vm600
          %v602 = vsel %vm601, %v594, %v598
          %v603 = vand.u32 2147483647, %v593
          %vm604 = vcmp.eq.f32.partialorder %v603, 8.507059e+37
          %v605 = vand.u32 %v593, 2147483648
          %v606 = vor.u32 1.1754944e-38, %v605
          %v607 = vsel %vm604, %v606, %v602
          %s608 = vtos %v607
          %s609 = smul.f32 %s591, %s608
          %s610 = sadd.f32 %s589, 1e-10
          %s611 = smul.f32 %s572, %s610
          %v612 = vstv %s611
          %v613 = vrcp.pop %v612
          %v614 = vmul.f32 %v612, %v613
          %v615 = vsub.f32 1.0, %v614
          %v616 = vmul.f32 %v613, %v615
          %v617 = vadd.f32 %v613, %v616
          %vm618 = vweird.f32 %v612
          %vm619 = vweird.f32 %v613
          %vm620 = vmor %vm618, %vm619
          %v621 = vsel %vm620, %v613, %v617
          %v622 = vand.u32 2147483647, %v612
          %vm623 = vcmp.eq.f32.partialorder %v622, 8.507059e+37
          %v624 = vand.u32 %v612, 2147483648
          %v625 = vor.u32 1.1754944e-38, %v624
          %v626 = vsel %vm623, %v625, %v621
          %s627 = vtos %v626
          %s628 = sadd.f32 %s609, 1e-10
          %s629 = smul.f32 %s592, %s628
          %v630 = vstv %s629
          %v631 = vrcp.pop %v630
          %v632 = vmul.f32 %v630, %v631
          %v633 = vsub.f32 1.0, %v632
          %v634 = vmul.f32 %v631, %v633
          %v635 = vadd.f32 %v631, %v634
          %vm636 = vweird.f32 %v630
          %vm637 = vweird.f32 %v631
          %vm638 = vmor %vm636, %vm637
          %v639 = vsel %vm638, %v631, %v635
          %v640 = vand.u32 2147483647, %v630
          %vm641 = vcmp.eq.f32.partialorder %v640, 8.507059e+37
          %v642 = vand.u32 %v630, 2147483648
          %v643 = vor.u32 1.1754944e-38, %v642
          %v644 = vsel %vm641, %v643, %v639
          %s645 = vtos %v644
          %v646 = vstv %s459
          %v647 = vsub.f32 %v323, %v646
          %v648 = vstv %s627
          %v649 = vmul.f32 %v647, %v648
          %v650 = vstv %s487
          %v651 = vsub.f32 %v322, %v650
          %v652 = vstv %s645
          %v653 = vmul.f32 %v651, %v652
          %v654 = vmin.f32 %v649, %v653
          %v655 = vrcp.pop 512.0
          %v656 = vmul.f32 512.0, %v655
          %v657 = vsub.f32 1.0, %v656
          %v658 = vmul.f32 %v655, %v657
          %v659 = vadd.f32 %v655, %v658
          %vm660 = vweird.f32 %v655
          %v661 = vsel %vm660, %v655, %v659
          %s662 = vtos %v661
          %s663 = smul.f32 %s350, %s662
          %v664 = vstv %s663
          %v665 = vsub.f32 %v323, %v664
          %v666 = vmul.f32 %v665, %v665
          %s667 = scalar_lea.vmem [#allocation2], 36
          %v668 = vld [vmem:[%s667] ss:$8 sm:$0xf]
          %v669 = vadd.f32 %v567, 0.0
          %v670 = vadd.f32 %v668, %v669
          %v671 = vlaneseq
          %vm672 = vcmp.ge.s32.totalorder %v671, 0
          %vm673 = vcmp.lt.s32.totalorder %v671, 512
          %vm674 = vmand %vm672, %vm673
          %675 = vst.msk [vmem:[%s667] ss:$8 sm:$0xf] %vm674, %v670
          %676 = vst.msk [vmem:[%s667] ss:$8 sm:$0x0] %vm674, %v670
          %s677 = scalar_lea.vmem [#allocation2], 37
          %v678 = vld [vmem:[%s677] ss:$8 sm:$0xf]
          %v679 = vadd.f32 %v654, 0.0
          %v680 = vadd.f32 %v678, %v679
          %681 = vst.msk [vmem:[%s677] ss:$8 sm:$0xf] %vm674, %v680
          %682 = vst.msk [vmem:[%s677] ss:$8 sm:$0x0] %vm674, %v680
          %s683 = scalar_lea.vmem [#allocation2], 38
          %v684 = vld [vmem:[%s683] ss:$8 sm:$0xf]
          %v685 = vadd.f32 %v666, 0.0
          %v686 = vadd.f32 %v684, %v685
          %687 = vst.msk [vmem:[%s683] ss:$8 sm:$0xf] %vm674, %v686
          %688 = vst.msk [vmem:[%s683] ss:$8 sm:$0x0] %vm674, %v686
        $region56: #{tpu_custom_call.1} parent=31 // pred_fallthru
          _
        %p689 = pnand %p318, %p215
        %p690 = pneg %p689
        // Predicated region
        $region57: #{tpu_custom_call.1} parent=31 // pred_check
          _
        $region58: #{tpu_custom_call.1} parent=31 // pred_check_branch
          %692 = sbr.rel (%p689) target = $region60
        $region59: #{tpu_custom_call.1} parent=31 // pred_region
          %v693 = vld [vmem:[#allocation2] ss:$8 sm:$0xf]
          %v695 = vperm.slane %v693, 0
          %v696 = vperm.slane %v693, 1
          %v697 = vperm.slane %v693, 2
          %v698 = vperm.slane %v693, 3
          %vm703 = vcmask 1040384
          %v704 = vsel %vm703, %v695, 0.0
          %v705 = vsel %vm703, %v696, 0.0
          %v706 = vadd.f32 %v704, %v705
          %v707 = vsel %vm703, %v697, 0.0
          %v708 = vadd.f32 %v706, %v707
          %v709 = vsel %vm703, %v698, 0.0
          %v710 = vadd.f32 %v708, %v709
          %711 = vadd.xlane.f32.xlu0 %v710
          %v712 = vpop.xlane.xlu0 %711
          %v713 = vrot.slane %v712, 4
          %v714 = vadd.f32 %v712, %v713
          %v715 = vrot.slane %v714, 2
          %v716 = vadd.f32 %v714, %v715
          %v717 = vrot.slane %v716, 1
          %v718 = vadd.f32 %v716, %v717
          %s719 = vtos %v718
          %s720 = scalar_lea.vmem [#allocation2], 1
          %v721 = vld [vmem:[%s720] ss:$8 sm:$0xf]
          %v723 = vperm.slane %v721, 0
          %v724 = vperm.slane %v721, 1
          %v725 = vperm.slane %v721, 2
          %v726 = vperm.slane %v721, 3
          %v731 = vsel %vm703, %v723, 0.0
          %v732 = vsel %vm703, %v724, 0.0
          %v733 = vadd.f32 %v731, %v732
          %v734 = vsel %vm703, %v725, 0.0
          %v735 = vadd.f32 %v733, %v734
          %v736 = vsel %vm703, %v726, 0.0
          %v737 = vadd.f32 %v735, %v736
          %738 = vadd.xlane.f32.xlu0 %v737
          %v739 = vpop.xlane.xlu0 %738
          %v740 = vrot.slane %v739, 4
          %v741 = vadd.f32 %v739, %v740
          %v742 = vrot.slane %v741, 2
          %v743 = vadd.f32 %v741, %v742
          %v744 = vrot.slane %v743, 1
          %v745 = vadd.f32 %v743, %v744
          %s746 = vtos %v745
          %s747 = scalar_lea.vmem [#allocation2], 2
          %v748 = vld [vmem:[%s747] ss:$8 sm:$0xf]
          %v750 = vperm.slane %v748, 0
          %v751 = vperm.slane %v748, 1
          %v752 = vperm.slane %v748, 2
          %v753 = vperm.slane %v748, 3
          %v758 = vsel %vm703, %v750, 0.0
          %v759 = vsel %vm703, %v751, 0.0
          %v760 = vadd.f32 %v758, %v759
          %v761 = vsel %vm703, %v752, 0.0
          %v762 = vadd.f32 %v760, %v761
          %v763 = vsel %vm703, %v753, 0.0
          %v764 = vadd.f32 %v762, %v763
          %765 = vadd.xlane.f32.xlu0 %v764
          %v766 = vpop.xlane.xlu0 %765
          %v767 = vrot.slane %v766, 4
          %v768 = vadd.f32 %v766, %v767
          %v769 = vrot.slane %v768, 2
          %v770 = vadd.f32 %v768, %v769
          %v771 = vrot.slane %v770, 1
          %v772 = vadd.f32 %v770, %v771
          %s773 = vtos %v772
          %s774 = scalar_lea.vmem [#allocation2], 3
          %v775 = vld [vmem:[%s774] ss:$8 sm:$0xf]
          %v777 = vperm.slane %v775, 0
          %v778 = vperm.slane %v775, 1
          %v779 = vperm.slane %v775, 2
          %v780 = vperm.slane %v775, 3
          %v785 = vsel %vm703, %v777, 0.0
          %v786 = vsel %vm703, %v778, 0.0
          %v787 = vadd.f32 %v785, %v786
          %v788 = vsel %vm703, %v779, 0.0
          %v789 = vadd.f32 %v787, %v788
          %v790 = vsel %vm703, %v780, 0.0
          %v791 = vadd.f32 %v789, %v790
          %792 = vadd.xlane.f32.xlu0 %v791
          %v793 = vpop.xlane.xlu0 %792
          %v794 = vrot.slane %v793, 4
          %v795 = vadd.f32 %v793, %v794
          %v796 = vrot.slane %v795, 2
          %v797 = vadd.f32 %v795, %v796
          %v798 = vrot.slane %v797, 1
          %v799 = vadd.f32 %v797, %v798
          %s800 = vtos %v799
          %s801 = scalar_lea.vmem [#allocation2], 4
          %v802 = vld [vmem:[%s801] ss:$8 sm:$0xf]
          %v804 = vperm.slane %v802, 0
          %v805 = vperm.slane %v802, 1
          %v806 = vperm.slane %v802, 2
          %v807 = vperm.slane %v802, 3
          %v812 = vsel %vm703, %v804, 0.0
          %v813 = vsel %vm703, %v805, 0.0
          %v814 = vadd.f32 %v812, %v813
          %v815 = vsel %vm703, %v806, 0.0
          %v816 = vadd.f32 %v814, %v815
          %v817 = vsel %vm703, %v807, 0.0
          %v818 = vadd.f32 %v816, %v817
          %819 = vadd.xlane.f32.xlu0 %v818
          %v820 = vpop.xlane.xlu0 %819
          %v821 = vrot.slane %v820, 4
          %v822 = vadd.f32 %v820, %v821
          %v823 = vrot.slane %v822, 2
          %v824 = vadd.f32 %v822, %v823
          %v825 = vrot.slane %v824, 1
          %v826 = vadd.f32 %v824, %v825
          %s827 = vtos %v826
          %s828 = scalar_lea.vmem [#allocation2], 5
          %v829 = vld [vmem:[%s828] ss:$8 sm:$0xf]
          %v831 = vperm.slane %v829, 0
          %v832 = vperm.slane %v829, 1
          %v833 = vperm.slane %v829, 2
          %v834 = vperm.slane %v829, 3
          %v839 = vsel %vm703, %v831, 0.0
          %v840 = vsel %vm703, %v832, 0.0
          %v841 = vadd.f32 %v839, %v840
          %v842 = vsel %vm703, %v833, 0.0
          %v843 = vadd.f32 %v841, %v842
          %v844 = vsel %vm703, %v834, 0.0
          %v845 = vadd.f32 %v843, %v844
          %846 = vadd.xlane.f32.xlu0 %v845
          %v847 = vpop.xlane.xlu0 %846
          %v848 = vrot.slane %v847, 4
          %v849 = vadd.f32 %v847, %v848
          %v850 = vrot.slane %v849, 2
          %v851 = vadd.f32 %v849, %v850
          %v852 = vrot.slane %v851, 1
          %v853 = vadd.f32 %v851, %v852
          %s854 = vtos %v853
          %s855 = scalar_lea.vmem [#allocation2], 6
          %v856 = vld [vmem:[%s855] ss:$8 sm:$0xf]
          %v858 = vperm.slane %v856, 0
          %v859 = vperm.slane %v856, 1
          %v860 = vperm.slane %v856, 2
          %v861 = vperm.slane %v856, 3
          %v866 = vsel %vm703, %v858, 0.0
          %v867 = vsel %vm703, %v859, 0.0
          %v868 = vadd.f32 %v866, %v867
          %v869 = vsel %vm703, %v860, 0.0
          %v870 = vadd.f32 %v868, %v869
          %v871 = vsel %vm703, %v861, 0.0
          %v872 = vadd.f32 %v870, %v871
          %873 = vadd.xlane.f32.xlu0 %v872
          %v874 = vpop.xlane.xlu0 %873
          %v875 = vrot.slane %v874, 4
          %v876 = vadd.f32 %v874, %v875
          %v877 = vrot.slane %v876, 2
          %v878 = vadd.f32 %v876, %v877
          %v879 = vrot.slane %v878, 1
          %v880 = vadd.f32 %v878, %v879
          %s881 = vtos %v880
          %s882 = scalar_lea.vmem [#allocation2], 7
          %v883 = vld [vmem:[%s882] ss:$8 sm:$0xf]
          %v885 = vperm.slane %v883, 0
          %v886 = vperm.slane %v883, 1
          %v887 = vperm.slane %v883, 2
          %v888 = vperm.slane %v883, 3
          %v893 = vsel %vm703, %v885, -inf
          %v894 = vsel %vm703, %v886, -inf
          %v895 = vsel %vm703, %v887, -inf
          %v896 = vsel %vm703, %v888, -inf
          %v897 = vmax.f32 %v893, %v894
          %v898 = vmax.f32 %v895, %v896
          %v899 = vmax.f32 %v897, %v898
          %900 = vmax.xlane.f32.xlu0 %v899
          %v901 = vpop.xlane.xlu0 %900
          %v902 = vrot.slane %v901, 4
          %v903 = vmax.f32 %v901, %v902
          %v904 = vrot.slane %v903, 2
          %v905 = vmax.f32 %v903, %v904
          %v906 = vrot.slane %v905, 1
          %v907 = vmax.f32 %v905, %v906
          %s908 = vtos %v907
          %s909 = scalar_lea.vmem [#allocation2], 32
          %v910 = vld [vmem:[%s909] ss:$8 sm:$0xf]
          %v912 = vperm.slane %v910, 0
          %v913 = vperm.slane %v910, 1
          %v914 = vperm.slane %v910, 2
          %v915 = vperm.slane %v910, 3
          %v920 = vsel %vm703, %v912, -inf
          %v921 = vsel %vm703, %v913, -inf
          %v922 = vsel %vm703, %v914, -inf
          %v923 = vsel %vm703, %v915, -inf
          %v924 = vmax.f32 %v920, %v921
          %v925 = vmax.f32 %v922, %v923
          %v926 = vmax.f32 %v924, %v925
          %927 = vmax.xlane.f32.xlu0 %v926
          %v928 = vpop.xlane.xlu0 %927
          %v929 = vrot.slane %v928, 4
          %v930 = vmax.f32 %v928, %v929
          %v931 = vrot.slane %v930, 2
          %v932 = vmax.f32 %v930, %v931
          %v933 = vrot.slane %v932, 1
          %v934 = vmax.f32 %v932, %v933
          %s935 = vtos %v934
          %s936 = scalar_lea.vmem [#allocation2], 33
          %v937 = vld [vmem:[%s936] ss:$8 sm:$0xf]
          %v939 = vperm.slane %v937, 0
          %v940 = vperm.slane %v937, 1
          %v941 = vperm.slane %v937, 2
          %v942 = vperm.slane %v937, 3
          %v947 = vsel %vm703, %v939, -inf
          %v948 = vsel %vm703, %v940, -inf
          %v949 = vsel %vm703, %v941, -inf
          %v950 = vsel %vm703, %v942, -inf
          %v951 = vmax.f32 %v947, %v948
          %v952 = vmax.f32 %v949, %v950
          %v953 = vmax.f32 %v951, %v952
          %954 = vmax.xlane.f32.xlu0 %v953
          %v955 = vpop.xlane.xlu0 %954
          %v956 = vrot.slane %v955, 4
          %v957 = vmax.f32 %v955, %v956
          %v958 = vrot.slane %v957, 2
          %v959 = vmax.f32 %v957, %v958
          %v960 = vrot.slane %v959, 1
          %v961 = vmax.f32 %v959, %v960
          %s962 = vtos %v961
          %s963 = scalar_lea.vmem [#allocation2], 36
          %v964 = vld [vmem:[%s963] ss:$8 sm:$0xf]
          %v966 = vperm.slane %v964, 0
          %v967 = vperm.slane %v964, 1
          %v968 = vperm.slane %v964, 2
          %v969 = vperm.slane %v964, 3
          %v974 = vsel %vm703, %v966, 0.0
          %v975 = vsel %vm703, %v967, 0.0
          %v976 = vadd.f32 %v974, %v975
          %v977 = vsel %vm703, %v968, 0.0
          %v978 = vadd.f32 %v976, %v977
          %v979 = vsel %vm703, %v969, 0.0
          %v980 = vadd.f32 %v978, %v979
          %981 = vadd.xlane.f32.xlu0 %v980
          %v982 = vpop.xlane.xlu0 %981
          %v983 = vrot.slane %v982, 4
          %v984 = vadd.f32 %v982, %v983
          %v985 = vrot.slane %v984, 2
          %v986 = vadd.f32 %v984, %v985
          %v987 = vrot.slane %v986, 1
          %v988 = vadd.f32 %v986, %v987
          %s989 = vtos %v988
          %s990 = scalar_lea.vmem [#allocation2], 37
          %v991 = vld [vmem:[%s990] ss:$8 sm:$0xf]
          %v993 = vperm.slane %v991, 0
          %v994 = vperm.slane %v991, 1
          %v995 = vperm.slane %v991, 2
          %v996 = vperm.slane %v991, 3
          %v1001 = vsel %vm703, %v993, 0.0
          %v1002 = vsel %vm703, %v994, 0.0
          %v1003 = vadd.f32 %v1001, %v1002
          %v1004 = vsel %vm703, %v995, 0.0
          %v1005 = vadd.f32 %v1003, %v1004
          %v1006 = vsel %vm703, %v996, 0.0
          %v1007 = vadd.f32 %v1005, %v1006
          %1008 = vadd.xlane.f32.xlu0 %v1007
          %v1009 = vpop.xlane.xlu0 %1008
          %v1010 = vrot.slane %v1009, 4
          %v1011 = vadd.f32 %v1009, %v1010
          %v1012 = vrot.slane %v1011, 2
          %v1013 = vadd.f32 %v1011, %v1012
          %v1014 = vrot.slane %v1013, 1
          %v1015 = vadd.f32 %v1013, %v1014
          %s1016 = vtos %v1015
          %s1017 = scalar_lea.vmem [#allocation2], 38
          %v1018 = vld [vmem:[%s1017] ss:$8 sm:$0xf]
          %v1020 = vperm.slane %v1018, 0
          %v1021 = vperm.slane %v1018, 1
          %v1022 = vperm.slane %v1018, 2
          %v1023 = vperm.slane %v1018, 3
          %v1028 = vsel %vm703, %v1020, 0.0
          %v1029 = vsel %vm703, %v1021, 0.0
          %v1030 = vadd.f32 %v1028, %v1029
          %v1031 = vsel %vm703, %v1022, 0.0
          %v1032 = vadd.f32 %v1030, %v1031
          %v1033 = vsel %vm703, %v1023, 0.0
          %v1034 = vadd.f32 %v1032, %v1033
          %1035 = vadd.xlane.f32.xlu0 %v1034
          %v1036 = vpop.xlane.xlu0 %1035
          %v1037 = vrot.slane %v1036, 4
          %v1038 = vadd.f32 %v1036, %v1037
          %v1039 = vrot.slane %v1038, 2
          %v1040 = vadd.f32 %v1038, %v1039
          %v1041 = vrot.slane %v1040, 1
          %v1042 = vadd.f32 %v1040, %v1041
          %s1043 = vtos %v1042
          %v1044 = vstv %s908
          %v1045 = vrcp.pop %v1044
          %v1046 = vmul.f32 %v1044, %v1045
          %v1047 = vsub.f32 1.0, %v1046
          %v1048 = vmul.f32 %v1045, %v1047
          %v1049 = vadd.f32 %v1045, %v1048
          %vm1050 = vweird.f32 %v1044
          %vm1051 = vweird.f32 %v1045
          %vm1052 = vmor %vm1050, %vm1051
          %v1053 = vsel %vm1052, %v1045, %v1049
          %v1054 = vand.u32 2147483647, %v1044
          %vm1055 = vcmp.eq.f32.partialorder %v1054, 8.507059e+37
          %v1056 = vand.u32 %v1044, 2147483648
          %v1057 = vor.u32 1.1754944e-38, %v1056
          %v1058 = vsel %vm1055, %v1057, %v1053
          %s1059 = vtos %v1058
          %s1060 = smul.f32 %s719, %s1059
          %s1061 = sadd.f32 %s773, 1e-10
          %v1062 = vstv %s1061
          %v1063 = vrcp.pop %v1062
          %v1064 = vmul.f32 %v1062, %v1063
          %v1065 = vsub.f32 1.0, %v1064
          %v1066 = vmul.f32 %v1063, %v1065
          %v1067 = vadd.f32 %v1063, %v1066
          %vm1068 = vweird.f32 %v1062
          %vm1069 = vweird.f32 %v1063
          %vm1070 = vmor %vm1068, %vm1069
          %v1071 = vsel %vm1070, %v1063, %v1067
          %v1072 = vand.u32 2147483647, %v1062
          %vm1073 = vcmp.eq.f32.partialorder %v1072, 8.507059e+37
          %v1074 = vand.u32 %v1062, 2147483648
          %v1075 = vor.u32 1.1754944e-38, %v1074
          %v1076 = vsel %vm1073, %v1075, %v1071
          %s1077 = vtos %v1076
          %s1078 = sadd.f32 %s1060, 1e-10
          %v1079 = vstv %s1078
          %v1080 = vrcp.pop %v1079
          %v1081 = vmul.f32 %v1079, %v1080
          %v1082 = vsub.f32 1.0, %v1081
          %v1083 = vmul.f32 %v1080, %v1082
          %v1084 = vadd.f32 %v1080, %v1083
          %vm1085 = vweird.f32 %v1079
          %vm1086 = vweird.f32 %v1080
          %vm1087 = vmor %vm1085, %vm1086
          %v1088 = vsel %vm1087, %v1080, %v1084
          %v1089 = vand.u32 2147483647, %v1079
          %vm1090 = vcmp.eq.f32.partialorder %v1089, 8.507059e+37
          %v1091 = vand.u32 %v1079, 2147483648
          %v1092 = vor.u32 1.1754944e-38, %v1091
          %v1093 = vsel %vm1090, %v1092, %v1088
          %s1094 = vtos %v1093
          %p1095 = scmp.gt.f32.partialorder %s935, 0.1
          %s1096 = scalar_select %p1095, 1, 0
          %s1097 = scvt.s32.f32 %s1096
          %s1098 = smul.f32 %s854, %s1077
          %s1099 = smul.f32 %s1098, %s1059
          %s1100 = smul.f32 %s1099, %s1094
          %s1101 = smul.f32 %s773, %s1077
          %s1102 = smul.f32 %s1060, %s1094
          %s1103 = smul.f32 %s800, %s1077
          %s1104 = smul.f32 %s1103, %s1077
          %s1105 = sadd.f32 %s1104, 1e-10
          %s1106 = smul.f32 %s746, %s1059
          %s1107 = smul.f32 %s1106, %s1059
          %s1108 = smul.f32 %s1107, %s1094
          %s1109 = smul.f32 %s1108, %s1094
          %s1110 = sadd.f32 %s1109, 1e-10
          %s1111 = smul.f32 %s1101, %s1102
          %v1112 = vrcp.pop 512.0
          %v1113 = vmul.f32 512.0, %v1112
          %v1114 = vsub.f32 1.0, %v1113
          %v1115 = vmul.f32 %v1112, %v1114
          %v1116 = vadd.f32 %v1112, %v1115
          %vm1117 = vweird.f32 %v1112
          %v1118 = vsel %vm1117, %v1112, %v1116
          %s1119 = vtos %v1118
          %s1120 = smul.f32 %s1111, %s1119
          %s1121 = ssub.f32 %s1100, %s1120
          %s1122 = smul.f32 %s1101, %s1101
          %v1123 = vrcp.pop 512.0
          %v1124 = vmul.f32 512.0, %v1123
          %v1125 = vsub.f32 1.0, %v1124
          %v1126 = vmul.f32 %v1123, %v1125
          %v1127 = vadd.f32 %v1123, %v1126
          %vm1128 = vweird.f32 %v1123
          %v1129 = vsel %vm1128, %v1123, %v1127
          %s1130 = vtos %v1129
          %s1131 = smul.f32 %s1122, %s1130
          %s1132 = ssub.f32 %s1105, %s1131
          %s1133 = smul.f32 %s1102, %s1102
          %v1134 = vrcp.pop 512.0
          %v1135 = vmul.f32 512.0, %v1134
          %v1136 = vsub.f32 1.0, %v1135
          %v1137 = vmul.f32 %v1134, %v1136
          %v1138 = vadd.f32 %v1134, %v1137
          %vm1139 = vweird.f32 %v1134
          %v1140 = vsel %vm1139, %v1134, %v1138
          %s1141 = vtos %v1140
          %s1142 = smul.f32 %s1133, %s1141
          %s1143 = ssub.f32 %s1110, %s1142
          %s1144 = smul.f32 %s1132, %s1143
          %s1145 = smul.f32 %s1121, -2.0
          %v1146 = vstv %s1144
          %v1147 = vrsqrt.pop %v1146
          %v1148 = vmul.f32 %v1147, %v1146
          %v1149 = vmul.f32 %v1148, %v1147
          %v1150 = vmul.f32 0.5, %v1149
          %v1151 = vsub.f32 1.5, %v1150
          %v1152 = vmul.f32 %v1147, %v1151
          %vm1153 = vweird.f32 %v1146
          %vm1154 = vweird.f32 %v1147
          %vm1155 = vmor %vm1153, %vm1154
          %v1156 = vsel %vm1155, %v1147, %v1152
          %s1157 = vtos %v1156
          %s1158 = smul.f32 %s1145, %s1157
          %s1159 = smul.f32 %s1097, %s1158
          %p1160 = scmp.gt.f32.partialorder %s962, 0.1
          %s1161 = scalar_select %p1160, 1, 0
          %s1162 = scvt.s32.f32 %s1161
          %v1163 = vrcp.pop 512.0
          %v1164 = vmul.f32 512.0, %v1163
          %v1165 = vsub.f32 1.0, %v1164
          %v1166 = vmul.f32 %v1163, %v1165
          %v1167 = vadd.f32 %v1163, %v1166
          %vm1168 = vweird.f32 %v1163
          %v1169 = vsel %vm1168, %v1163, %v1167
          %s1170 = vtos %v1169
          %s1171 = smul.f32 %s1060, %s1170
          %s1172 = smul.f32 %s1043, %s1059
          %s1173 = smul.f32 %s1172, %s1059
          %v1174 = vrcp.pop 511.0
          %v1175 = vmul.f32 511.0, %v1174
          %v1176 = vsub.f32 1.0, %v1175
          %v1177 = vmul.f32 %v1174, %v1176
          %v1178 = vadd.f32 %v1174, %v1177
          %vm1179 = vweird.f32 %v1174
          %v1180 = vsel %vm1179, %v1174, %v1178
          %s1181 = vtos %v1180
          %s1182 = smul.f32 %s1173, %s1181
          %v1183 = vstv %s1182
          %v1184 = vrsqrt.pop %v1183
          %v1185 = vmul.f32 %v1184, %v1183
          %v1186 = vmul.f32 %v1185, %v1184
          %v1187 = vmul.f32 0.5, %v1186
          %v1188 = vsub.f32 1.5, %v1187
          %v1189 = vmul.f32 %v1184, %v1188
          %v1190 = vmul.f32 %v1183, %v1189
          %vm1191 = vcmp.eq.f32.partialorder %v1183, inf
          %v1192 = vsel %vm1191, %v1183, %v1190
          %vm1193 = vcmp.eq.f32.partialorder %v1183, 0.0
          %v1194 = vand.u32 %v1183, 2147483648
          %v1195 = vsel %vm1193, %v1194, %v1192
          %s1196 = vtos %v1195
          %s1197 = smul.f32 %s881, %s1059
          %s1198 = smul.f32 %s1171, %s827
          %s1199 = ssub.f32 %s1197, %s1198
          %s1200 = sadd.f32 %s1196, 1e-10
          %v1201 = vstv %s1200
          %v1202 = vrcp.pop %v1201
          %v1203 = vmul.f32 %v1201, %v1202
          %v1204 = vsub.f32 1.0, %v1203
          %v1205 = vmul.f32 %v1202, %v1204
          %v1206 = vadd.f32 %v1202, %v1205
          %vm1207 = vweird.f32 %v1201
          %vm1208 = vweird.f32 %v1202
          %vm1209 = vmor %vm1207, %vm1208
          %v1210 = vsel %vm1209, %v1202, %v1206
          %v1211 = vand.u32 2147483647, %v1201
          %vm1212 = vcmp.eq.f32.partialorder %v1211, 8.507059e+37
          %v1213 = vand.u32 %v1201, 2147483648
          %v1214 = vor.u32 1.1754944e-38, %v1213
          %v1215 = vsel %vm1212, %v1214, %v1210
          %s1216 = vtos %v1215
          %s1217 = smul.f32 %s1199, %s1216
          %s1218 = smul.f32 %s1162, %s1217
          %v1219 = vstv %s827
          %v1220 = vrcp.pop %v1219
          %v1221 = vmul.f32 %v1219, %v1220
          %v1222 = vsub.f32 1.0, %v1221
          %v1223 = vmul.f32 %v1220, %v1222
          %v1224 = vadd.f32 %v1220, %v1223
          %vm1225 = vweird.f32 %v1219
          %vm1226 = vweird.f32 %v1220
          %vm1227 = vmor %vm1225, %vm1226
          %v1228 = vsel %vm1227, %v1220, %v1224
          %v1229 = vand.u32 2147483647, %v1219
          %vm1230 = vcmp.eq.f32.partialorder %v1229, 8.507059e+37
          %v1231 = vand.u32 %v1219, 2147483648
          %v1232 = vor.u32 1.1754944e-38, %v1231
          %v1233 = vsel %vm1230, %v1232, %v1228
          %s1234 = vtos %v1233
          %s1235 = smul.f32 %s1218, %s1234
          %s1236 = smul.f32 %s1235, -1.0
          %s1237 = sadd.f32 %s989, %s1159
          %s1238 = sadd.f32 %s1237, %s1236
          %s1239 = sadd.f32 %s1238, %s1016
          %s1240 = scalar_lea.smem [#allocation9], 0
          %1241 = sst [smem:[%s1240]] %s1239
        $region60: #{tpu_custom_call.1} parent=31 // pred_fallthru
          _
        // Predicated region
        $region61: #{tpu_custom_call.1} parent=31 // pred_check
          %p1242 = pneg %p120
        $region62: #{tpu_custom_call.1} parent=31 // pred_check_branch
          %1244 = sbr.rel (%p1242) target = $region64
        $region63: #{tpu_custom_call.1} parent=31 // pred_region
          %1246 = vsyncadd [#allocation5], 0
          %s1248 = sshll.u32 %s3, 4
          %s1249 = int_to_ptr.hbm [resolvable:$true] %s1248
          %1251 = dma.smem_to_hbm [#allocation9], 16, %s1249, [#allocation5]
        $region64: #{tpu_custom_call.1} parent=31 // pred_fallthru
          _
        // Predicated region
        $region65: #{tpu_custom_call.1} parent=31 // pred_check
          %p1252 = pneg %p120
        $region66: #{tpu_custom_call.1} parent=31 // pred_check_branch
          %1254 = sbr.rel (%p1252) target = $region68
        $region67: #{tpu_custom_call.1} parent=31 // pred_region
          %1256 = dma.done [#allocation5], 16
        $region68: #{tpu_custom_call.1} parent=31 // pred_fallthru
          _
        %1257 = sfence
      $region32: #{tpu_custom_call.1} parent=5 // pred_fallthru
        _
      %p1258 = scmp.le.s32.totalorder 2, %s12
      // Predicated region
      $region69: #{tpu_custom_call.1} parent=5 // pred_check
        %p1259 = pneg %p1258
      $region70: #{tpu_custom_call.1} parent=5 // pred_check_branch
        %1261 = sbr.rel (%p1259) target = $region72
      $region71: #{tpu_custom_call.1} parent=5 // pred_region
        %s1262 = ssub.s32 %s12, 2
      $region72: #{tpu_custom_call.1} parent=5 // pred_fallthru
        _
    $region6: #{tpu_custom_call.1} parent=1 // loop_footer
      %s16 = sadd.s32 1, %s12
    $region7: #{tpu_custom_call.1} parent=1 // loop_footer_branch
      %11 = sbr.rel target = $region3
    $region8: #{tpu_custom_call.1} parent=1 // loop_exit
      _
    %1263 = vsyncpa [#allocation4], 1
    %s1264 = scalar_lea.sflag [#allocation4], 1
    %1265 = vsyncpa %s1264, 1
    %1266 = vsyncpa [#allocation7], 1
    %1267 = vsyncpa [#allocation5], 1
    %s1268 = scalar_lea.sflag [#allocation5], 1
    %1269 = vsyncpa %s1268, 1

</llo_original>
